<compile_context>
chip_gen: v5e
topology: v5e:2x2
jax: 0.10.0
libtpu: 0.0.40
codegen_flags: <defaults>
</compile_context>

<pallas_src>
import jax
import jax.numpy as jnp
from jax import lax
from jax.experimental import pallas as pl
from jax.experimental.pallas import tpu as pltpu

LN_EPS = 1e-5  # torch.nn.LayerNorm default


def _layernorm_t(h, gamma_col, beta_col, ones_row):
    """LayerNorm over the feature (sublane) axis of an (H, TB) activation.

    Statistics come from a ones-row matmul (MXU) so the VPU/XLU slots stay
    free; HIGHEST precision keeps the f32 accuracy of the reference.
    """
    inv_h = 1.0 / h.shape[0]
    sums = jnp.dot(ones_row, h, preferred_element_type=jnp.float32,
                   precision=lax.Precision.HIGHEST)            # (1, TB)
    sqs = jnp.dot(ones_row, h * h, preferred_element_type=jnp.float32,
                  precision=lax.Precision.HIGHEST)             # (1, TB)
    mu = sums * inv_h
    var = sqs * inv_h - mu * mu
    return (h - mu) * lax.rsqrt(var + LN_EPS) * gamma_col + beta_col


def critic_kernel(s_ref, a_ref, p_ref, o_ref):
    # s_ref: (S, TB), a_ref: (A, TB), p_ref: (H, S+A+H+8), o_ref: (1, TB)
    S = s_ref.shape[0]
    A = a_ref.shape[0]
    H = p_ref.shape[0]
    KIN = S + A
    c = KIN + H

    w1t = p_ref[:, 0:KIN]            # (H, KIN)  fc1 weight, transposed
    w2t = p_ref[:, KIN:KIN + H]      # (H, H)    fc2 weight, transposed
    b1 = p_ref[:, c + 0:c + 1]       # (H, 1)
    g1 = p_ref[:, c + 1:c + 2]
    be1 = p_ref[:, c + 2:c + 3]
    b2 = p_ref[:, c + 3:c + 4]
    g2 = p_ref[:, c + 4:c + 5]
    be2 = p_ref[:, c + 5:c + 6]
    w3c = p_ref[:, c + 6:c + 7]      # (H, 1)    fc3 weight (column)
    b3 = p_ref[0:1, c + 7:c + 8]     # (1, 1)

    ones_row = jnp.ones((1, H), jnp.float32)

    s = s_ref[...]                   # (S, TB)  batch on lanes
    a = a_ref[...]                   # (A, TB)

    # fc1: K = S+A is tiny, so do it as K broadcast-FMAs on the VPU instead
    # of MXU pushes with K=2/K=1 (removes the result-FIFO pops + extra add).
    acc = w1t[:, 0:1] * s[0:1, :]                              # (H, TB)
    for k in range(1, S):
        acc = acc + w1t[:, k:k + 1] * s[k:k + 1, :]
    for k in range(A):
        acc = acc + w1t[:, S + k:S + k + 1] * a[k:k + 1, :]
    h = acc + b1

    h = _layernorm_t(h, g1, be1, ones_row)
    h = jnp.maximum(h, 0.0)

    # fc2: (H, H) @ (H, TB) -> (H, TB); batch stays lane-dense.
    h = jnp.dot(w2t, h, preferred_element_type=jnp.float32,
                precision=lax.Precision.HIGHEST) + b2
    h = _layernorm_t(h, g2, be2, ones_row)
    h = jnp.maximum(h, 0.0)

    # fc3: contract the feature (sublane) axis -> lane-dense (1, TB) row.
    y = jnp.sum(w3c * h, axis=0, keepdims=True) + b3
    o_ref[...] = y.astype(o_ref.dtype)


def _round_up(n, m):
    return ((n + m - 1) // m) * m


def critic_forward(state, action, params, *, block_b=2048):
    """Runs the Critic forward pass. Returns (B, 1) float32."""
    state = state.astype(jnp.float32)
    action = action.astype(jnp.float32)
    B, S = state.shape
    A = action.shape[1]
    H = params["w2"].shape[0]
    KIN = S + A

    # Batch tile on the lane axis: multiple of 128, large enough to amortize
    # per-grid-step overhead.
    B_ceil = _round_up(B, 128)
    TB = min(_round_up(max(block_b, 128), 128), B_ceil)
    # Keep >= 2 grid steps when the batch allows it so ("parallel",) can
    # shard the batch axis across both TensorCores on v7x.
    if TB == B_ceil and B_ceil >= 256:
        TB = _round_up(B_ceil // 2, 128)
    G = pl.cdiv(B, TB)
    B_pad = G * TB

    # Transposed inputs: batch on lanes, features on sublanes.  Padded tail
    # columns are zeros; they pass through LayerNorm with var=0
    # (rsqrt(eps) ~ 316, finite in f32) and are dropped after the call.
    state_t = jnp.pad(state.T, ((0, 0), (0, B_pad - B)))       # (S, B_pad)
    action_t = jnp.pad(action.T, ((0, 0), (0, B_pad - B)))     # (A, B_pad)

    # Pack every parameter into one (H, KIN+H+8) resident operand.
    def _col(v):
        return jnp.asarray(v, jnp.float32).reshape(H, 1)

    packed = jnp.concatenate(
        [
            params["w1"].astype(jnp.float32).T,                # (H, KIN)
            params["w2"].astype(jnp.float32).T,                # (H, H)
            _col(params["b1"]), _col(params["g1"]), _col(params["be1"]),
            _col(params["b2"]), _col(params["g2"]), _col(params["be2"]),
            params["w3"].astype(jnp.float32).reshape(H, 1),
            jnp.broadcast_to(
                jnp.asarray(params["b3"], jnp.float32).reshape(1, 1), (H, 1)),
        ],
        axis=1,
    )
    ncols = KIN + H + 8

    flops = 2 * B_pad * H * (KIN + H + 3)          # fc1 + fc2 + fc3 + LN stats
    transcendentals = 2 * B_pad                    # one rsqrt per LN per sample
    bytes_accessed = 4 * (B_pad * (KIN + 1) + H * ncols)

    out = pl.pallas_call(
        critic_kernel,
        out_shape=jax.ShapeDtypeStruct((1, B_pad), jnp.float32),
        grid=(G,),
        in_specs=[
            pl.BlockSpec((S, TB), lambda i: (0, i)),       # state (transposed)
            pl.BlockSpec((A, TB), lambda i: (0, i)),       # action (transposed)
            pl.BlockSpec((H, ncols), lambda i: (0, 0)),    # packed params (resident)
        ],
        out_specs=pl.BlockSpec((1, TB), lambda i: (0, i)),  # lane-dense row
        compiler_params=pltpu.CompilerParams(
            dimension_semantics=("parallel",),              # 2 TCs on v7x
            # Actual footprint is < 2 MiB at TB=2048; generous headroom that
            # still fits every generation's scoped default.
            vmem_limit_bytes=16 * 1024 * 1024,
        ),
        cost_estimate=pl.CostEstimate(
            flops=flops,
            transcendentals=transcendentals,
            bytes_accessed=bytes_accessed,
        ),
    )(state_t, action_t, packed)

    # (1, B_pad) lane-dense -> (B, 1), dropping padded columns.
    return out[0, :B].reshape(B, 1)


def init_params(key, state_dim, action_dim, hidden=32):
    """Deterministic init mirroring torch.nn.Linear defaults (U[-1/sqrt(fan_in), +])."""
    def linear(k, fan_in, fan_out):
        kw, kb = jax.random.split(k)
        bound = 1.0 / jnp.sqrt(fan_in)
        w = jax.random.uniform(kw, (fan_in, fan_out), jnp.float32, -bound, bound)
        b = jax.random.uniform(kb, (1, fan_out), jnp.float32, -bound, bound)
        return w, b

    k1, k2, k3 = jax.random.split(key, 3)
    w1, b1 = linear(k1, state_dim + action_dim, hidden)
    w2, b2 = linear(k2, hidden, hidden)
    w3, b3 = linear(k3, hidden, 1)
    return {
        "w1": w1, "b1": b1,
        "g1": jnp.ones((1, hidden), jnp.float32), "be1": jnp.zeros((1, hidden), jnp.float32),
        "w2": w2, "b2": b2,
        "g2": jnp.ones((1, hidden), jnp.float32), "be2": jnp.zeros((1, hidden), jnp.float32),
        "w3": w3, "b3": b3,
    }


def _ln_ref(h, gamma, beta):
    mu = jnp.mean(h, axis=-1, keepdims=True)
    var = jnp.mean((h - mu) ** 2, axis=-1, keepdims=True)
    return (h - mu) * lax.rsqrt(var + LN_EPS) * gamma + beta


def critic_ref(state, action, p):
    """Pure-JAX reference for correctness checking."""
    x = jnp.concatenate([state, action], axis=1)
    h = x @ p["w1"] + p["b1"]
    h = _ln_ref(h, p["g1"], p["be1"])
    h = jnp.maximum(h, 0.0)
    h = h @ p["w2"] + p["b2"]
    h = _ln_ref(h, p["g2"], p["be2"])
    h = jnp.maximum(h, 0.0)
    return h @ p["w3"] + p["b3"]


if __name__ == "__main__":
    # MountainCarContinuous-ish: state_dim=2, action_dim=1
    state_dim, action_dim = 2, 1
    key = jax.random.PRNGKey(0)
    kp, ks, ka = jax.random.split(key, 3)
    params = init_params(kp, state_dim, action_dim)

    # Small batch (single padded tile).
    batch = 8
    state = jax.random.normal(ks, (batch, state_dim), jnp.float32)
    action = jax.random.normal(ka, (batch, action_dim), jnp.float32)
    out = jax.block_until_ready(critic_forward(state, action, params))
    ref = critic_ref(state, action, params)
    assert out.shape == (batch, 1), out.shape
    assert jnp.allclose(out, ref, atol=1e-4, rtol=1e-4), (out, ref)

    # Larger batch with a small block to exercise the multi-tile grid + tail padding.
    batch2 = 300
    ks2, ka2 = jax.random.split(jax.random.PRNGKey(1))
    state2 = jax.random.normal(ks2, (batch2, state_dim), jnp.float32)
    action2 = jax.random.normal(ka2, (batch2, action_dim), jnp.float32)
    out2 = jax.block_until_ready(critic_forward(state2, action2, params, block_b=128))
    ref2 = critic_ref(state2, action2, params)
    assert out2.shape == (batch2, 1), out2.shape
    assert jnp.allclose(out2, ref2, atol=1e-4, rtol=1e-4), (out2, ref2)

    print("KERNEL_OK")
</pallas_src>

<mosaic_0001>
module attributes {stable_mosaic.version = 11 : i64} {
  func.func @critic_kernel(%arg0: i32, %arg1: memref<2x128xf32, #tpu.memory_space<vmem>>, %arg2: memref<1x128xf32, #tpu.memory_space<vmem>>, %arg3: memref<32x43xf32, #tpu.memory_space<vmem>>, %arg4: memref<1x128xf32, #tpu.memory_space<vmem>>) attributes {dimension_semantics = [#tpu.dimension_semantics<parallel>], iteration_bounds = array<i64: 1>, scalar_prefetch = 0 : i64, scratch_operands = 0 : i64, tpu.core_type = #tpu.core_type<tc>, window_params = [{transform_indices = @transform_0, window_bounds = array<i64: 2, 128>}, {transform_indices = @transform_1, window_bounds = array<i64: 1, 128>}, {pipeline_mode = #tpu.pipeline_mode<synchronous>, transform_indices = @transform_2, window_bounds = array<i64: 32, 43>}, {transform_indices = @transform_3, window_bounds = array<i64: 1, 128>}]} {
    %c0 = arith.constant 0 : index
    %c0_0 = arith.constant 0 : index
    %0 = vector.load %arg3[%c0, %c0_0] : memref<32x43xf32, #tpu.memory_space<vmem>>, vector<32x3xf32>
    %c0_1 = arith.constant 0 : index
    %c3 = arith.constant 3 : index
    %1 = vector.load %arg3[%c0_1, %c3] : memref<32x43xf32, #tpu.memory_space<vmem>>, vector<32x32xf32>
    %c0_2 = arith.constant 0 : index
    %c35 = arith.constant 35 : index
    %2 = vector.load %arg3[%c0_2, %c35] : memref<32x43xf32, #tpu.memory_space<vmem>>, vector<32x1xf32>
    %c0_3 = arith.constant 0 : index
    %c36 = arith.constant 36 : index
    %3 = vector.load %arg3[%c0_3, %c36] : memref<32x43xf32, #tpu.memory_space<vmem>>, vector<32x1xf32>
    %c0_4 = arith.constant 0 : index
    %c37 = arith.constant 37 : index
    %4 = vector.load %arg3[%c0_4, %c37] : memref<32x43xf32, #tpu.memory_space<vmem>>, vector<32x1xf32>
    %c0_5 = arith.constant 0 : index
    %c38 = arith.constant 38 : index
    %5 = vector.load %arg3[%c0_5, %c38] : memref<32x43xf32, #tpu.memory_space<vmem>>, vector<32x1xf32>
    %c0_6 = arith.constant 0 : index
    %c39 = arith.constant 39 : index
    %6 = vector.load %arg3[%c0_6, %c39] : memref<32x43xf32, #tpu.memory_space<vmem>>, vector<32x1xf32>
    %c0_7 = arith.constant 0 : index
    %c40 = arith.constant 40 : index
    %7 = vector.load %arg3[%c0_7, %c40] : memref<32x43xf32, #tpu.memory_space<vmem>>, vector<32x1xf32>
    %c0_8 = arith.constant 0 : index
    %c41 = arith.constant 41 : index
    %8 = vector.load %arg3[%c0_8, %c41] : memref<32x43xf32, #tpu.memory_space<vmem>>, vector<32x1xf32>
    %c0_9 = arith.constant 0 : index
    %c42 = arith.constant 42 : index
    %9 = vector.load %arg3[%c0_9, %c42] : memref<32x43xf32, #tpu.memory_space<vmem>>, vector<1x1xf32>
    %cst = arith.constant 1.000000e+00 : f32
    %10 = vector.broadcast %cst : f32 to vector<1x32xf32>
    %c0_10 = arith.constant 0 : index
    %c0_11 = arith.constant 0 : index
    %11 = vector.load %arg1[%c0_10, %c0_11] : memref<2x128xf32, #tpu.memory_space<vmem>>, vector<2x128xf32>
    %c0_12 = arith.constant 0 : index
    %c0_13 = arith.constant 0 : index
    %12 = vector.load %arg2[%c0_12, %c0_13] : memref<1x128xf32, #tpu.memory_space<vmem>>, vector<1x128xf32>
    %13 = vector.extract_strided_slice %0 {offsets = [0, 0], sizes = [32, 1], strides = [1, 1]} : vector<32x3xf32> to vector<32x1xf32>
    %14 = vector.extract_strided_slice %11 {offsets = [0, 0], sizes = [1, 128], strides = [1, 1]} : vector<2x128xf32> to vector<1x128xf32>
    %15 = vector.broadcast %13 : vector<32x1xf32> to vector<32x128xf32>
    %16 = vector.broadcast %14 : vector<1x128xf32> to vector<32x128xf32>
    %17 = arith.mulf %15, %16 : vector<32x128xf32>
    %18 = vector.extract_strided_slice %0 {offsets = [0, 1], sizes = [32, 1], strides = [1, 1]} : vector<32x3xf32> to vector<32x1xf32>
    %19 = vector.extract_strided_slice %11 {offsets = [1, 0], sizes = [1, 128], strides = [1, 1]} : vector<2x128xf32> to vector<1x128xf32>
    %20 = vector.broadcast %18 : vector<32x1xf32> to vector<32x128xf32>
    %21 = vector.broadcast %19 : vector<1x128xf32> to vector<32x128xf32>
    %22 = arith.mulf %20, %21 : vector<32x128xf32>
    %23 = arith.addf %17, %22 : vector<32x128xf32>
    %24 = vector.extract_strided_slice %0 {offsets = [0, 2], sizes = [32, 1], strides = [1, 1]} : vector<32x3xf32> to vector<32x1xf32>
    %25 = vector.broadcast %24 : vector<32x1xf32> to vector<32x128xf32>
    %26 = vector.broadcast %12 : vector<1x128xf32> to vector<32x128xf32>
    %27 = arith.mulf %25, %26 : vector<32x128xf32>
    %28 = arith.addf %23, %27 : vector<32x128xf32>
    %29 = vector.broadcast %2 : vector<32x1xf32> to vector<32x128xf32>
    %30 = arith.addf %28, %29 : vector<32x128xf32>
    %cst_14 = arith.constant dense<0.000000e+00> : vector<1x128xf32>
    %31 = tpu.matmul %10, %30, %cst_14 {dimension_numbers = #tpu.dot_dimension_numbers<[1], [0], [0], [1], [0, 0, 1, 1], [], []>, precision = #tpu.contract_precision<fp32>} : vector<1x32xf32>, vector<32x128xf32>, vector<1x128xf32> -> vector<1x128xf32>
    %32 = arith.mulf %30, %30 : vector<32x128xf32>
    %cst_15 = arith.constant dense<0.000000e+00> : vector<1x128xf32>
    %33 = tpu.matmul %10, %32, %cst_15 {dimension_numbers = #tpu.dot_dimension_numbers<[1], [0], [0], [1], [0, 0, 1, 1], [], []>, precision = #tpu.contract_precision<fp32>} : vector<1x32xf32>, vector<32x128xf32>, vector<1x128xf32> -> vector<1x128xf32>
    %cst_16 = arith.constant 3.125000e-02 : f32
    %34 = vector.broadcast %cst_16 : f32 to vector<1x128xf32>
    %35 = arith.mulf %31, %34 : vector<1x128xf32>
    %cst_17 = arith.constant 3.125000e-02 : f32
    %36 = vector.broadcast %cst_17 : f32 to vector<1x128xf32>
    %37 = arith.mulf %33, %36 : vector<1x128xf32>
    %38 = arith.mulf %35, %35 : vector<1x128xf32>
    %39 = arith.subf %37, %38 : vector<1x128xf32>
    %40 = vector.broadcast %35 : vector<1x128xf32> to vector<32x128xf32>
    %41 = arith.subf %30, %40 : vector<32x128xf32>
    %cst_18 = arith.constant 9.99999974E-6 : f32
    %42 = vector.broadcast %cst_18 : f32 to vector<1x128xf32>
    %43 = arith.addf %39, %42 : vector<1x128xf32>
    %44 = math.rsqrt %43 : vector<1x128xf32>
    %45 = vector.broadcast %44 : vector<1x128xf32> to vector<32x128xf32>
    %46 = arith.mulf %41, %45 : vector<32x128xf32>
    %47 = vector.broadcast %3 : vector<32x1xf32> to vector<32x128xf32>
    %48 = arith.mulf %46, %47 : vector<32x128xf32>
    %49 = vector.broadcast %4 : vector<32x1xf32> to vector<32x128xf32>
    %50 = arith.addf %48, %49 : vector<32x128xf32>
    %cst_19 = arith.constant 0.000000e+00 : f32
    %51 = vector.broadcast %cst_19 : f32 to vector<32x128xf32>
    %52 = arith.maximumf %50, %51 : vector<32x128xf32>
    %cst_20 = arith.constant dense<0.000000e+00> : vector<32x128xf32>
    %53 = tpu.matmul %1, %52, %cst_20 {dimension_numbers = #tpu.dot_dimension_numbers<[1], [0], [0], [1], [0, 0, 1, 1], [], []>, precision = #tpu.contract_precision<fp32>} : vector<32x32xf32>, vector<32x128xf32>, vector<32x128xf32> -> vector<32x128xf32>
    %54 = vector.broadcast %5 : vector<32x1xf32> to vector<32x128xf32>
    %55 = arith.addf %53, %54 : vector<32x128xf32>
    %cst_21 = arith.constant dense<0.000000e+00> : vector<1x128xf32>
    %56 = tpu.matmul %10, %55, %cst_21 {dimension_numbers = #tpu.dot_dimension_numbers<[1], [0], [0], [1], [0, 0, 1, 1], [], []>, precision = #tpu.contract_precision<fp32>} : vector<1x32xf32>, vector<32x128xf32>, vector<1x128xf32> -> vector<1x128xf32>
    %57 = arith.mulf %55, %55 : vector<32x128xf32>
    %cst_22 = arith.constant dense<0.000000e+00> : vector<1x128xf32>
    %58 = tpu.matmul %10, %57, %cst_22 {dimension_numbers = #tpu.dot_dimension_numbers<[1], [0], [0], [1], [0, 0, 1, 1], [], []>, precision = #tpu.contract_precision<fp32>} : vector<1x32xf32>, vector<32x128xf32>, vector<1x128xf32> -> vector<1x128xf32>
    %cst_23 = arith.constant 3.125000e-02 : f32
    %59 = vector.broadcast %cst_23 : f32 to vector<1x128xf32>
    %60 = arith.mulf %56, %59 : vector<1x128xf32>
    %cst_24 = arith.constant 3.125000e-02 : f32
    %61 = vector.broadcast %cst_24 : f32 to vector<1x128xf32>
    %62 = arith.mulf %58, %61 : vector<1x128xf32>
    %63 = arith.mulf %60, %60 : vector<1x128xf32>
    %64 = arith.subf %62, %63 : vector<1x128xf32>
    %65 = vector.broadcast %60 : vector<1x128xf32> to vector<32x128xf32>
    %66 = arith.subf %55, %65 : vector<32x128xf32>
    %cst_25 = arith.constant 9.99999974E-6 : f32
    %67 = vector.broadcast %cst_25 : f32 to vector<1x128xf32>
    %68 = arith.addf %64, %67 : vector<1x128xf32>
    %69 = math.rsqrt %68 : vector<1x128xf32>
    %70 = vector.broadcast %69 : vector<1x128xf32> to vector<32x128xf32>
    %71 = arith.mulf %66, %70 : vector<32x128xf32>
    %72 = vector.broadcast %6 : vector<32x1xf32> to vector<32x128xf32>
    %73 = arith.mulf %71, %72 : vector<32x128xf32>
    %74 = vector.broadcast %7 : vector<32x1xf32> to vector<32x128xf32>
    %75 = arith.addf %73, %74 : vector<32x128xf32>
    %cst_26 = arith.constant 0.000000e+00 : f32
    %76 = vector.broadcast %cst_26 : f32 to vector<32x128xf32>
    %77 = arith.maximumf %75, %76 : vector<32x128xf32>
    %78 = vector.broadcast %8 : vector<32x1xf32> to vector<32x128xf32>
    %79 = arith.mulf %78, %77 : vector<32x128xf32>
    %cst_27 = arith.constant dense<0.000000e+00> : vector<128xf32>
    %80 = vector.multi_reduction <add>, %79, %cst_27 [0] : vector<32x128xf32> to vector<128xf32>
    %81 = vector.shape_cast %80 : vector<128xf32> to vector<1x128xf32>
    %82 = vector.broadcast %9 : vector<1x1xf32> to vector<1x128xf32>
    %83 = arith.addf %81, %82 : vector<1x128xf32>
    %c0_28 = arith.constant 0 : index
    %c0_29 = arith.constant 0 : index
    %84 = vector.load %arg4[%c0_28, %c0_29] : memref<1x128xf32, #tpu.memory_space<vmem>>, vector<1x128xf32>
    tpu.vector_store %arg4[%c0_28, %c0_29], %83 {strides = array<i32>} : memref<1x128xf32, #tpu.memory_space<vmem>>, vector<1x128xf32>,
    return
  }
  func.func @transform_0(%arg0: i32) -> (i32, i32) {
    %c0_i32 = arith.constant 0 : i32
    %c0_i32_0 = arith.constant 0 : i32
    return %c0_i32, %arg0 : i32, i32
  }
  func.func @transform_1(%arg0: i32) -> (i32, i32) {
    %c0_i32 = arith.constant 0 : i32
    %c0_i32_0 = arith.constant 0 : i32
    return %c0_i32, %arg0 : i32, i32
  }
  func.func @transform_2(%arg0: i32) -> (i32, i32) {
    %c0_i32 = arith.constant 0 : i32
    %c0_i32_0 = arith.constant 0 : i32
    %c0_i32_1 = arith.constant 0 : i32
    return %c0_i32, %c0_i32_0 : i32, i32
  }
  func.func @transform_3(%arg0: i32) -> (i32, i32) {
    %c0_i32 = arith.constant 0 : i32
    %c0_i32_0 = arith.constant 0 : i32
    return %c0_i32, %arg0 : i32, i32
  }
}

</mosaic_0001>

<llo_original>
// kernel: tpu_custom_call.1
$region0: #{tpu_custom_call.1}
  #allocation0 [shape = 'u32[]', space=smem, size = 0x4, offset = 0x4, fixed_abs, tag = 'smem constant byte address 0x4 - core index']
  #allocation1 [shape = 'u32[72,128]{1,0:T(1,128)}', space=vmem, size = 0x9000, scoped, tag = 'internal scratch']
  %s0 = inlined_call_operand.hbm [shape: f32[2,128], index: 0, kind: input, shape index: {}]
  %s1 = inlined_call_operand.hbm [shape: f32[1,128], index: 1, kind: input, shape index: {}]
  %s2 = inlined_call_operand.hbm [shape: f32[32,43], index: 2, kind: input, shape index: {}]
  %s3 = inlined_call_operand.hbm [shape: f32[1,128], index: 3, kind: output, shape index: {}]
  %s4 = sld [smem:[#allocation0]]
  $region34: #{tpu_custom_call.1} parent=0
    _
  %s6 = ssub.s32 1, %s4
  %s7 = scalar_select 0, %s6, %s4
  $region1: #{tpu_custom_call.1} parent=0
    #allocation2 [shape = 'u8[1024]{0}', space=vmem, size = 0x400, scoped, tag = 'input window, operand 0, single buffered']
    #allocation3 [shape = 's32[1]{0}', space=sflag, size = 0x4, scoped, tag = 'scoped memory for tpu_custom_call.1']
    #allocation4 [shape = 's32[1]{0}', space=sflag, size = 0x4, scoped, tag = 'scoped memory for tpu_custom_call.1']
    #allocation5 [shape = 'u8[512]{0}', space=vmem, size = 0x400, scoped, tag = 'input window, operand 1, single buffered']
    #allocation6 [shape = 's32[1]{0}', space=sflag, size = 0x4, scoped, tag = 'scoped memory for tpu_custom_call.1']
    #allocation7 [shape = 'u8[16384]{0}', space=vmem, size = 0x4000, scoped, tag = 'input window, operand 2, single buffered']
    #allocation8 [shape = 'u8[512]{0}', space=vmem, size = 0x400, scoped, tag = 'output window, operand 0, single buffered']
    %8 = vsyncpa [#allocation3], 0
    %9 = vsyncpa [#allocation6], 0
    %10 = vsyncpa [#allocation4], 0
    // Predicated region
    $region2: #{tpu_custom_call.1} parent=1 // pred_check
      _
    $region3: #{tpu_custom_call.1} parent=1 // pred_check_branch
      %12 = sbr.rel (0) target = $region5
    $region4: #{tpu_custom_call.1} parent=1 // pred_region
      %14 = vsyncadd [#allocation3], 0
      %s16 = sshll.u32 %s0, 4
      %s17 = int_to_ptr.hbm [resolvable:$true] %s16
      %s18 = sshll.u32 [#allocation2], 4
      %s19 = int_to_ptr.vmem [resolvable:$true] %s18
      %21 = dma.hbm_to_vmem [thread:$0]  %s17, 32, %s19, [#allocation3]
    $region5: #{tpu_custom_call.1} parent=1 // pred_fallthru
      _
    // Predicated region
    $region6: #{tpu_custom_call.1} parent=1 // pred_check
      _
    $region7: #{tpu_custom_call.1} parent=1 // pred_check_branch
      %23 = sbr.rel (0) target = $region9
    $region8: #{tpu_custom_call.1} parent=1 // pred_region
      %25 = vsyncadd [#allocation6], 0
      %s27 = sshll.u32 %s1, 4
      %s28 = int_to_ptr.hbm [resolvable:$true] %s27
      %s29 = sshll.u32 [#allocation5], 4
      %s30 = int_to_ptr.vmem [resolvable:$true] %s29
      %32 = dma.hbm_to_vmem [thread:$0]  %s28, 16, %s30, [#allocation6]
    $region9: #{tpu_custom_call.1} parent=1 // pred_fallthru
      _
    // Predicated region
    $region10: #{tpu_custom_call.1} parent=1 // pred_check
      _
    $region11: #{tpu_custom_call.1} parent=1 // pred_check_branch
      %34 = sbr.rel (0) target = $region13
    $region12: #{tpu_custom_call.1} parent=1 // pred_region
      %36 = vsyncadd [#allocation6], 0
      %s37 = sshll.u32 %s2, 4
      %s38 = int_to_ptr.hbm [resolvable:$true] %s37
      %s39 = sshll.u32 [#allocation7], 4
      %s40 = int_to_ptr.vmem [resolvable:$true] %s39
      %45 = dma.hbm_to_vmem [thread:$0]  %s38, 512, %s40, [#allocation6], 128, 128, 8
    $region13: #{tpu_custom_call.1} parent=1 // pred_fallthru
      _
    // Predicated region
    $region14: #{tpu_custom_call.1} parent=1 // pred_check
      _
    $region15: #{tpu_custom_call.1} parent=1 // pred_check_branch
      %47 = sbr.rel (0) target = $region17
    $region16: #{tpu_custom_call.1} parent=1 // pred_region
      %49 = dma.done [#allocation3], 32
    $region17: #{tpu_custom_call.1} parent=1 // pred_fallthru
      _
    // Predicated region
    $region18: #{tpu_custom_call.1} parent=1 // pred_check
      _
    $region19: #{tpu_custom_call.1} parent=1 // pred_check_branch
      %51 = sbr.rel (0) target = $region21
    $region20: #{tpu_custom_call.1} parent=1 // pred_region
      %53 = dma.done [#allocation6], 16
    $region21: #{tpu_custom_call.1} parent=1 // pred_fallthru
      _
    // Predicated region
    $region22: #{tpu_custom_call.1} parent=1 // pred_check
      _
    $region23: #{tpu_custom_call.1} parent=1 // pred_check_branch
      %55 = sbr.rel (0) target = $region25
    $region24: #{tpu_custom_call.1} parent=1 // pred_region
      %57 = dma.done [#allocation6], 512
    $region25: #{tpu_custom_call.1} parent=1 // pred_fallthru
      _
    %v58 = vld [vmem:[#allocation7] sm:$0xff]
    %v59 = vld [vmem:[#allocation7 + $0x8] sm:$0xff]
    %v60 = vld [vmem:[#allocation7 + $0x10] sm:$0xff]
    %v61 = vld [vmem:[#allocation7 + $0x18] sm:$0xff]
    %v62 = vld [vmem:[#allocation7] sm:$0x1]
    %v63 = vld [vmem:[#allocation2] sm:$0x3]
    %v64 = vld [vmem:[#allocation5] sm:$0x1]
    %66 = vset.pattern.permute.xlu0 0
    %67 = vperm.xlu0 %66, %v58
    %v68 = vpop.permute.xlu0 %67
    %71 = vset.pattern.permute.xlu0 0
    %72 = vperm.xlu0 %71, %v59
    %v73 = vpop.permute.xlu0 %72
    %76 = vset.pattern.permute.xlu0 0
    %77 = vperm.xlu0 %76, %v60
    %v78 = vpop.permute.xlu0 %77
    %81 = vset.pattern.permute.xlu0 0
    %82 = vperm.xlu0 %81, %v61
    %v83 = vpop.permute.xlu0 %82
    %v85 = vperm.slane %v63, 0
    %v86 = vmul.f32 %v68, %v85
    %v87 = vmul.f32 %v73, %v85
    %v88 = vmul.f32 %v78, %v85
    %v89 = vmul.f32 %v83, %v85
    %90 = vset.pattern.permute.xlu0 1
    %91 = vperm.xlu0 %90, %v58
    %v92 = vpop.permute.xlu0 %91
    %94 = vset.pattern.permute.xlu0 1
    %95 = vperm.xlu0 %94, %v59
    %v96 = vpop.permute.xlu0 %95
    %98 = vset.pattern.permute.xlu0 1
    %99 = vperm.xlu0 %98, %v60
    %v100 = vpop.permute.xlu0 %99
    %102 = vset.pattern.permute.xlu0 1
    %103 = vperm.xlu0 %102, %v61
    %v104 = vpop.permute.xlu0 %103
    %v106 = vperm.slane %v63, 1
    %v107 = vmul.f32 %v92, %v106
    %v108 = vmul.f32 %v96, %v106
    %v109 = vmul.f32 %v100, %v106
    %v110 = vmul.f32 %v104, %v106
    %v111 = vadd.f32 %v86, %v107
    %v112 = vadd.f32 %v87, %v108
    %v113 = vadd.f32 %v88, %v109
    %v114 = vadd.f32 %v89, %v110
    %115 = vset.pattern.permute.xlu0 2
    %116 = vperm.xlu0 %115, %v58
    %v117 = vpop.permute.xlu0 %116
    %119 = vset.pattern.permute.xlu0 2
    %120 = vperm.xlu0 %119, %v59
    %v121 = vpop.permute.xlu0 %120
    %123 = vset.pattern.permute.xlu0 2
    %124 = vperm.xlu0 %123, %v60
    %v125 = vpop.permute.xlu0 %124
    %127 = vset.pattern.permute.xlu0 2
    %128 = vperm.xlu0 %127, %v61
    %v129 = vpop.permute.xlu0 %128
    %v132 = vperm.slane %v64, 0
    %v134 = vmul.f32 %v117, %v132
    %v135 = vmul.f32 %v121, %v132
    %v136 = vmul.f32 %v125, %v132
    %v137 = vmul.f32 %v129, %v132
    %v138 = vadd.f32 %v111, %v134
    %v139 = vadd.f32 %v112, %v135
    %v140 = vadd.f32 %v113, %v136
    %v141 = vadd.f32 %v114, %v137
    %142 = vset.pattern.permute.xlu0 35
    %143 = vperm.xlu0 %142, %v58
    %v144 = vpop.permute.xlu0 %143
    %146 = vset.pattern.permute.xlu0 35
    %147 = vperm.xlu0 %146, %v59
    %v148 = vpop.permute.xlu0 %147
    %150 = vset.pattern.permute.xlu0 35
    %151 = vperm.xlu0 %150, %v60
    %v152 = vpop.permute.xlu0 %151
    %154 = vset.pattern.permute.xlu0 35
    %155 = vperm.xlu0 %154, %v61
    %v156 = vpop.permute.xlu0 %155
    %v158 = vadd.f32 %v138, %v144
    %v159 = vadd.f32 %v139, %v148
    %v160 = vadd.f32 %v140, %v152
    %v161 = vadd.f32 %v141, %v156
    %vm162 = vcmask 261120
    %v164 = vsel %vm162, 1.0, 0
    %166 = vmatpush.msra.mxu0 0.0
    %167 = vmatpush.msra.mxu0 0.0
    %168 = vmatpush.msra.mxu0 0.0
    %169 = vmatpush.msra.mxu0 0.0
    %170 = vmatpush.msra.mxu0 0.0
    %171 = vmatpush.msra.mxu0 0.0
    %172 = vmatpush.msra.mxu0 0.0
    %173 = vmatpush.msra.mxu0 0.0
    %174 = vmatpush.msra.mxu0 0.0
    %175 = vmatpush.msra.mxu0 0.0
    %176 = vmatpush.msra.mxu0 0.0
    %177 = vmatpush.msra.mxu0 0.0
    %v178 = vand.u32 %v161, 4294901760
    %179 = vmatpush.msra.mxu0 %v178
    %v180 = vand.u32 %v160, 4294901760
    %181 = vmatpush.msra.mxu0 %v180
    %v182 = vand.u32 %v159, 4294901760
    %183 = vmatpush.msra.mxu0 %v182
    %v184 = vand.u32 %v158, 4294901760
    %185 = vmatpush.msra.mxu0 %v184
    %v186 = vand.u32 %v164, 4294901760
    %v187 = vsub.f32 %v164, %v186
    %v188 = vand.u32 %v187, 4294901760
    %v189 = vsub.f32 %v187, %v188
    %v190 = vand.u32 %v189, 4294901760
    %191 = vmatmul.f32.gmra.mxu0 %v190
    %v192 = vpop.f32.mrf.mxu0
    %v193 = vadd.f32 0.0, %v192
    %194 = vdwg.mxu0
    %195 = vmatpush.msra.mxu0 0.0
    %196 = vmatpush.msra.mxu0 0.0
    %197 = vmatpush.msra.mxu0 0.0
    %198 = vmatpush.msra.mxu0 0.0
    %199 = vmatpush.msra.mxu0 0.0
    %200 = vmatpush.msra.mxu0 0.0
    %201 = vmatpush.msra.mxu0 0.0
    %202 = vmatpush.msra.mxu0 0.0
    %203 = vmatpush.msra.mxu0 0.0
    %204 = vmatpush.msra.mxu0 0.0
    %205 = vmatpush.msra.mxu0 0.0
    %206 = vmatpush.msra.mxu0 0.0
    %v207 = vand.u32 %v161, 4294901760
    %v208 = vsub.f32 %v161, %v207
    %v209 = vand.u32 %v208, 4294901760
    %v210 = vsub.f32 %v208, %v209
    %v211 = vand.u32 %v210, 4294901760
    %212 = vmatpush.msra.mxu0 %v211
    %v213 = vand.u32 %v160, 4294901760
    %v214 = vsub.f32 %v160, %v213
    %v215 = vand.u32 %v214, 4294901760
    %v216 = vsub.f32 %v214, %v215
    %v217 = vand.u32 %v216, 4294901760
    %218 = vmatpush.msra.mxu0 %v217
    %v219 = vand.u32 %v159, 4294901760
    %v220 = vsub.f32 %v159, %v219
    %v221 = vand.u32 %v220, 4294901760
    %v222 = vsub.f32 %v220, %v221
    %v223 = vand.u32 %v222, 4294901760
    %224 = vmatpush.msra.mxu0 %v223
    %v225 = vand.u32 %v158, 4294901760
    %v226 = vsub.f32 %v158, %v225
    %v227 = vand.u32 %v226, 4294901760
    %v228 = vsub.f32 %v226, %v227
    %v229 = vand.u32 %v228, 4294901760
    %230 = vmatpush.msra.mxu0 %v229
    %v231 = vand.u32 %v164, 4294901760
    %232 = vmatmul.f32.gmra.mxu0 %v231
    %v233 = vpop.f32.mrf.mxu0
    %v234 = vadd.f32 %v193, %v233
    %235 = vdwg.mxu0
    %236 = vmatpush.msra.mxu0 0.0
    %237 = vmatpush.msra.mxu0 0.0
    %238 = vmatpush.msra.mxu0 0.0
    %239 = vmatpush.msra.mxu0 0.0
    %240 = vmatpush.msra.mxu0 0.0
    %241 = vmatpush.msra.mxu0 0.0
    %242 = vmatpush.msra.mxu0 0.0
    %243 = vmatpush.msra.mxu0 0.0
    %244 = vmatpush.msra.mxu0 0.0
    %245 = vmatpush.msra.mxu0 0.0
    %246 = vmatpush.msra.mxu0 0.0
    %247 = vmatpush.msra.mxu0 0.0
    %v248 = vand.u32 %v161, 4294901760
    %v249 = vsub.f32 %v161, %v248
    %250 = vmatpush.msra.mxu0 %v249
    %v251 = vand.u32 %v160, 4294901760
    %v252 = vsub.f32 %v160, %v251
    %253 = vmatpush.msra.mxu0 %v252
    %v254 = vand.u32 %v159, 4294901760
    %v255 = vsub.f32 %v159, %v254
    %256 = vmatpush.msra.mxu0 %v255
    %v257 = vand.u32 %v158, 4294901760
    %v258 = vsub.f32 %v158, %v257
    %259 = vmatpush.msra.mxu0 %v258
    %v260 = vand.u32 %v164, 4294901760
    %v261 = vsub.f32 %v164, %v260
    %262 = vmatmul.f32.gmra.mxu0 %v261
    %v263 = vpop.f32.mrf.mxu0
    %v264 = vadd.f32 %v234, %v263
    %265 = vdwg.mxu0
    %266 = vmatpush.msra.mxu0 0.0
    %267 = vmatpush.msra.mxu0 0.0
    %268 = vmatpush.msra.mxu0 0.0
    %269 = vmatpush.msra.mxu0 0.0
    %270 = vmatpush.msra.mxu0 0.0
    %271 = vmatpush.msra.mxu0 0.0
    %272 = vmatpush.msra.mxu0 0.0
    %273 = vmatpush.msra.mxu0 0.0
    %274 = vmatpush.msra.mxu0 0.0
    %275 = vmatpush.msra.mxu0 0.0
    %276 = vmatpush.msra.mxu0 0.0
    %277 = vmatpush.msra.mxu0 0.0
    %v278 = vand.u32 %v161, 4294901760
    %279 = vmatpush.msra.mxu0 %v278
    %v280 = vand.u32 %v160, 4294901760
    %281 = vmatpush.msra.mxu0 %v280
    %v282 = vand.u32 %v159, 4294901760
    %283 = vmatpush.msra.mxu0 %v282
    %v284 = vand.u32 %v158, 4294901760
    %285 = vmatpush.msra.mxu0 %v284
    %v286 = vand.u32 %v164, 4294901760
    %v287 = vsub.f32 %v164, %v286
    %v288 = vand.u32 %v287, 4294901760
    %289 = vmatmul.f32.gmra.mxu0 %v288
    %v290 = vpop.f32.mrf.mxu0
    %v291 = vadd.f32 %v264, %v290
    %292 = vdwg.mxu0
    %293 = vmatpush.msra.mxu0 0.0
    %294 = vmatpush.msra.mxu0 0.0
    %295 = vmatpush.msra.mxu0 0.0
    %296 = vmatpush.msra.mxu0 0.0
    %297 = vmatpush.msra.mxu0 0.0
    %298 = vmatpush.msra.mxu0 0.0
    %299 = vmatpush.msra.mxu0 0.0
    %300 = vmatpush.msra.mxu0 0.0
    %301 = vmatpush.msra.mxu0 0.0
    %302 = vmatpush.msra.mxu0 0.0
    %303 = vmatpush.msra.mxu0 0.0
    %304 = vmatpush.msra.mxu0 0.0
    %v305 = vand.u32 %v161, 4294901760
    %v306 = vsub.f32 %v161, %v305
    %v307 = vand.u32 %v306, 4294901760
    %308 = vmatpush.msra.mxu0 %v307
    %v309 = vand.u32 %v160, 4294901760
    %v310 = vsub.f32 %v160, %v309
    %v311 = vand.u32 %v310, 4294901760
    %312 = vmatpush.msra.mxu0 %v311
    %v313 = vand.u32 %v159, 4294901760
    %v314 = vsub.f32 %v159, %v313
    %v315 = vand.u32 %v314, 4294901760
    %316 = vmatpush.msra.mxu0 %v315
    %v317 = vand.u32 %v158, 4294901760
    %v318 = vsub.f32 %v158, %v317
    %v319 = vand.u32 %v318, 4294901760
    %320 = vmatpush.msra.mxu0 %v319
    %v321 = vand.u32 %v164, 4294901760
    %322 = vmatmul.f32.gmra.mxu0 %v321
    %v323 = vpop.f32.mrf.mxu0
    %v324 = vadd.f32 %v291, %v323
    %325 = vdwg.mxu0
    %326 = vmatpush.msra.mxu0 0.0
    %327 = vmatpush.msra.mxu0 0.0
    %328 = vmatpush.msra.mxu0 0.0
    %329 = vmatpush.msra.mxu0 0.0
    %330 = vmatpush.msra.mxu0 0.0
    %331 = vmatpush.msra.mxu0 0.0
    %332 = vmatpush.msra.mxu0 0.0
    %333 = vmatpush.msra.mxu0 0.0
    %334 = vmatpush.msra.mxu0 0.0
    %335 = vmatpush.msra.mxu0 0.0
    %336 = vmatpush.msra.mxu0 0.0
    %337 = vmatpush.msra.mxu0 0.0
    %v338 = vand.u32 %v161, 4294901760
    %339 = vmatpush.msra.mxu0 %v338
    %v340 = vand.u32 %v160, 4294901760
    %341 = vmatpush.msra.mxu0 %v340
    %v342 = vand.u32 %v159, 4294901760
    %343 = vmatpush.msra.mxu0 %v342
    %v344 = vand.u32 %v158, 4294901760
    %345 = vmatpush.msra.mxu0 %v344
    %v346 = vand.u32 %v164, 4294901760
    %347 = vmatmul.f32.gmra.mxu0 %v346
    %v348 = vpop.f32.mrf.mxu0
    %v349 = vadd.f32 %v324, %v348
    %350 = vdwg.mxu0
    %v351 = vmul.f32 %v158, %v158
    %v352 = vmul.f32 %v159, %v159
    %v353 = vmul.f32 %v160, %v160
    %v354 = vmul.f32 %v161, %v161
    %355 = vmatpush.msra.mxu0 0.0
    %356 = vmatpush.msra.mxu0 0.0
    %357 = vmatpush.msra.mxu0 0.0
    %358 = vmatpush.msra.mxu0 0.0
    %359 = vmatpush.msra.mxu0 0.0
    %360 = vmatpush.msra.mxu0 0.0
    %361 = vmatpush.msra.mxu0 0.0
    %362 = vmatpush.msra.mxu0 0.0
    %363 = vmatpush.msra.mxu0 0.0
    %364 = vmatpush.msra.mxu0 0.0
    %365 = vmatpush.msra.mxu0 0.0
    %366 = vmatpush.msra.mxu0 0.0
    %v367 = vand.u32 %v354, 4294901760
    %368 = vmatpush.msra.mxu0 %v367
    %v369 = vand.u32 %v353, 4294901760
    %370 = vmatpush.msra.mxu0 %v369
    %v371 = vand.u32 %v352, 4294901760
    %372 = vmatpush.msra.mxu0 %v371
    %v373 = vand.u32 %v351, 4294901760
    %374 = vmatpush.msra.mxu0 %v373
    %v375 = vand.u32 %v164, 4294901760
    %v376 = vsub.f32 %v164, %v375
    %v377 = vand.u32 %v376, 4294901760
    %v378 = vsub.f32 %v376, %v377
    %v379 = vand.u32 %v378, 4294901760
    %380 = vmatmul.f32.gmra.mxu0 %v379
    %v381 = vpop.f32.mrf.mxu0
    %v382 = vadd.f32 0.0, %v381
    %383 = vdwg.mxu0
    %384 = vmatpush.msra.mxu0 0.0
    %385 = vmatpush.msra.mxu0 0.0
    %386 = vmatpush.msra.mxu0 0.0
    %387 = vmatpush.msra.mxu0 0.0
    %388 = vmatpush.msra.mxu0 0.0
    %389 = vmatpush.msra.mxu0 0.0
    %390 = vmatpush.msra.mxu0 0.0
    %391 = vmatpush.msra.mxu0 0.0
    %392 = vmatpush.msra.mxu0 0.0
    %393 = vmatpush.msra.mxu0 0.0
    %394 = vmatpush.msra.mxu0 0.0
    %395 = vmatpush.msra.mxu0 0.0
    %v396 = vand.u32 %v354, 4294901760
    %v397 = vsub.f32 %v354, %v396
    %v398 = vand.u32 %v397, 4294901760
    %v399 = vsub.f32 %v397, %v398
    %v400 = vand.u32 %v399, 4294901760
    %401 = vmatpush.msra.mxu0 %v400
    %v402 = vand.u32 %v353, 4294901760
    %v403 = vsub.f32 %v353, %v402
    %v404 = vand.u32 %v403, 4294901760
    %v405 = vsub.f32 %v403, %v404
    %v406 = vand.u32 %v405, 4294901760
    %407 = vmatpush.msra.mxu0 %v406
    %v408 = vand.u32 %v352, 4294901760
    %v409 = vsub.f32 %v352, %v408
    %v410 = vand.u32 %v409, 4294901760
    %v411 = vsub.f32 %v409, %v410
    %v412 = vand.u32 %v411, 4294901760
    %413 = vmatpush.msra.mxu0 %v412
    %v414 = vand.u32 %v351, 4294901760
    %v415 = vsub.f32 %v351, %v414
    %v416 = vand.u32 %v415, 4294901760
    %v417 = vsub.f32 %v415, %v416
    %v418 = vand.u32 %v417, 4294901760
    %419 = vmatpush.msra.mxu0 %v418
    %v420 = vand.u32 %v164, 4294901760
    %421 = vmatmul.f32.gmra.mxu0 %v420
    %v422 = vpop.f32.mrf.mxu0
    %v423 = vadd.f32 %v382, %v422
    %424 = vdwg.mxu0
    %425 = vmatpush.msra.mxu0 0.0
    %426 = vmatpush.msra.mxu0 0.0
    %427 = vmatpush.msra.mxu0 0.0
    %428 = vmatpush.msra.mxu0 0.0
    %429 = vmatpush.msra.mxu0 0.0
    %430 = vmatpush.msra.mxu0 0.0
    %431 = vmatpush.msra.mxu0 0.0
    %432 = vmatpush.msra.mxu0 0.0
    %433 = vmatpush.msra.mxu0 0.0
    %434 = vmatpush.msra.mxu0 0.0
    %435 = vmatpush.msra.mxu0 0.0
    %436 = vmatpush.msra.mxu0 0.0
    %v437 = vand.u32 %v354, 4294901760
    %v438 = vsub.f32 %v354, %v437
    %439 = vmatpush.msra.mxu0 %v438
    %v440 = vand.u32 %v353, 4294901760
    %v441 = vsub.f32 %v353, %v440
    %442 = vmatpush.msra.mxu0 %v441
    %v443 = vand.u32 %v352, 4294901760
    %v444 = vsub.f32 %v352, %v443
    %445 = vmatpush.msra.mxu0 %v444
    %v446 = vand.u32 %v351, 4294901760
    %v447 = vsub.f32 %v351, %v446
    %448 = vmatpush.msra.mxu0 %v447
    %v449 = vand.u32 %v164, 4294901760
    %v450 = vsub.f32 %v164, %v449
    %451 = vmatmul.f32.gmra.mxu0 %v450
    %v452 = vpop.f32.mrf.mxu0
    %v453 = vadd.f32 %v423, %v452
    %454 = vdwg.mxu0
    %455 = vmatpush.msra.mxu0 0.0
    %456 = vmatpush.msra.mxu0 0.0
    %457 = vmatpush.msra.mxu0 0.0
    %458 = vmatpush.msra.mxu0 0.0
    %459 = vmatpush.msra.mxu0 0.0
    %460 = vmatpush.msra.mxu0 0.0
    %461 = vmatpush.msra.mxu0 0.0
    %462 = vmatpush.msra.mxu0 0.0
    %463 = vmatpush.msra.mxu0 0.0
    %464 = vmatpush.msra.mxu0 0.0
    %465 = vmatpush.msra.mxu0 0.0
    %466 = vmatpush.msra.mxu0 0.0
    %v467 = vand.u32 %v354, 4294901760
    %468 = vmatpush.msra.mxu0 %v467
    %v469 = vand.u32 %v353, 4294901760
    %470 = vmatpush.msra.mxu0 %v469
    %v471 = vand.u32 %v352, 4294901760
    %472 = vmatpush.msra.mxu0 %v471
    %v473 = vand.u32 %v351, 4294901760
    %474 = vmatpush.msra.mxu0 %v473
    %v475 = vand.u32 %v164, 4294901760
    %v476 = vsub.f32 %v164, %v475
    %v477 = vand.u32 %v476, 4294901760
    %478 = vmatmul.f32.gmra.mxu0 %v477
    %v479 = vpop.f32.mrf.mxu0
    %v480 = vadd.f32 %v453, %v479
    %481 = vdwg.mxu0
    %482 = vmatpush.msra.mxu0 0.0
    %483 = vmatpush.msra.mxu0 0.0
    %484 = vmatpush.msra.mxu0 0.0
    %485 = vmatpush.msra.mxu0 0.0
    %486 = vmatpush.msra.mxu0 0.0
    %487 = vmatpush.msra.mxu0 0.0
    %488 = vmatpush.msra.mxu0 0.0
    %489 = vmatpush.msra.mxu0 0.0
    %490 = vmatpush.msra.mxu0 0.0
    %491 = vmatpush.msra.mxu0 0.0
    %492 = vmatpush.msra.mxu0 0.0
    %493 = vmatpush.msra.mxu0 0.0
    %v494 = vand.u32 %v354, 4294901760
    %v495 = vsub.f32 %v354, %v494
    %v496 = vand.u32 %v495, 4294901760
    %497 = vmatpush.msra.mxu0 %v496
    %v498 = vand.u32 %v353, 4294901760
    %v499 = vsub.f32 %v353, %v498
    %v500 = vand.u32 %v499, 4294901760
    %501 = vmatpush.msra.mxu0 %v500
    %v502 = vand.u32 %v352, 4294901760
    %v503 = vsub.f32 %v352, %v502
    %v504 = vand.u32 %v503, 4294901760
    %505 = vmatpush.msra.mxu0 %v504
    %v506 = vand.u32 %v351, 4294901760
    %v507 = vsub.f32 %v351, %v506
    %v508 = vand.u32 %v507, 4294901760
    %509 = vmatpush.msra.mxu0 %v508
    %v510 = vand.u32 %v164, 4294901760
    %511 = vmatmul.f32.gmra.mxu0 %v510
    %v512 = vpop.f32.mrf.mxu0
    %v513 = vadd.f32 %v480, %v512
    %514 = vdwg.mxu0
    %515 = vmatpush.msra.mxu0 0.0
    %516 = vmatpush.msra.mxu0 0.0
    %517 = vmatpush.msra.mxu0 0.0
    %518 = vmatpush.msra.mxu0 0.0
    %519 = vmatpush.msra.mxu0 0.0
    %520 = vmatpush.msra.mxu0 0.0
    %521 = vmatpush.msra.mxu0 0.0
    %522 = vmatpush.msra.mxu0 0.0
    %523 = vmatpush.msra.mxu0 0.0
    %524 = vmatpush.msra.mxu0 0.0
    %525 = vmatpush.msra.mxu0 0.0
    %526 = vmatpush.msra.mxu0 0.0
    %v527 = vand.u32 %v354, 4294901760
    %528 = vmatpush.msra.mxu0 %v527
    %v529 = vand.u32 %v353, 4294901760
    %530 = vmatpush.msra.mxu0 %v529
    %v531 = vand.u32 %v352, 4294901760
    %532 = vmatpush.msra.mxu0 %v531
    %v533 = vand.u32 %v351, 4294901760
    %534 = vmatpush.msra.mxu0 %v533
    %v535 = vand.u32 %v164, 4294901760
    %536 = vmatmul.f32.gmra.mxu0 %v535
    %v537 = vpop.f32.mrf.mxu0
    %v538 = vadd.f32 %v513, %v537
    %539 = vdwg.mxu0
    %v540 = vmul.f32 %v349, 0.03125
    %v541 = vmul.f32 %v538, 0.03125
    %v542 = vmul.f32 %v540, %v540
    %v543 = vsub.f32 %v541, %v542
    %v544 = vperm.slane %v540, 0
    %v545 = vsub.f32 %v158, %v544
    %v546 = vsub.f32 %v159, %v544
    %v547 = vsub.f32 %v160, %v544
    %v548 = vsub.f32 %v161, %v544
    %v549 = vadd.f32 %v543, 1e-05
    %v550 = vrsqrt.pop %v549
    %v551 = vmul.f32 %v550, %v549
    %v552 = vmul.f32 %v551, %v550
    %v553 = vmul.f32 0.5, %v552
    %v554 = vsub.f32 1.5, %v553
    %v555 = vmul.f32 %v550, %v554
    %vm556 = vweird.f32 %v549
    %vm557 = vweird.f32 %v550
    %vm558 = vmor %vm556, %vm557
    %v559 = vsel %vm558, %v550, %v555
    %v560 = vperm.slane %v559, 0
    %v561 = vmul.f32 %v545, %v560
    %v562 = vmul.f32 %v546, %v560
    %v563 = vmul.f32 %v547, %v560
    %v564 = vmul.f32 %v548, %v560
    %565 = vset.pattern.permute.xlu0 36
    %566 = vperm.xlu0 %565, %v58
    %v567 = vpop.permute.xlu0 %566
    %569 = vset.pattern.permute.xlu0 36
    %570 = vperm.xlu0 %569, %v59
    %v571 = vpop.permute.xlu0 %570
    %573 = vset.pattern.permute.xlu0 36
    %574 = vperm.xlu0 %573, %v60
    %v575 = vpop.permute.xlu0 %574
    %577 = vset.pattern.permute.xlu0 36
    %578 = vperm.xlu0 %577, %v61
    %v579 = vpop.permute.xlu0 %578
    %v581 = vmul.f32 %v561, %v567
    %v582 = vmul.f32 %v562, %v571
    %v583 = vmul.f32 %v563, %v575
    %v584 = vmul.f32 %v564, %v579
    %585 = vset.pattern.permute.xlu0 37
    %586 = vperm.xlu0 %585, %v58
    %v587 = vpop.permute.xlu0 %586
    %589 = vset.pattern.permute.xlu0 37
    %590 = vperm.xlu0 %589, %v59
    %v591 = vpop.permute.xlu0 %590
    %593 = vset.pattern.permute.xlu0 37
    %594 = vperm.xlu0 %593, %v60
    %v595 = vpop.permute.xlu0 %594
    %597 = vset.pattern.permute.xlu0 37
    %598 = vperm.xlu0 %597, %v61
    %v599 = vpop.permute.xlu0 %598
    %v601 = vadd.f32 %v581, %v587
    %v602 = vadd.f32 %v582, %v591
    %v603 = vadd.f32 %v583, %v595
    %v604 = vadd.f32 %v584, %v599
    %v605 = vmax.f32 %v601, 0.0
    %v606 = vmax.f32 %v602, 0.0
    %v607 = vmax.f32 %v603, 0.0
    %v608 = vmax.f32 %v604, 0.0
    %609 = vset.pattern.permute.xlu0 38
    %610 = vperm.xlu0 %609, %v58
    %v611 = vpop.permute.xlu0 %610
    %613 = vset.pattern.permute.xlu0 38
    %614 = vperm.xlu0 %613, %v59
    %v615 = vpop.permute.xlu0 %614
    %617 = vset.pattern.permute.xlu0 38
    %618 = vperm.xlu0 %617, %v60
    %v619 = vpop.permute.xlu0 %618
    %621 = vset.pattern.permute.xlu0 38
    %622 = vperm.xlu0 %621, %v61
    %v623 = vpop.permute.xlu0 %622
    %625 = vrot.lane.b32.xlu0 %v58, 125
    %v626 = vpop.permute.xlu0 %625
    %627 = vrot.lane.b32.xlu0 %v59, 125
    %v628 = vpop.permute.xlu0 %627
    %629 = vrot.lane.b32.xlu0 %v60, 125
    %v630 = vpop.permute.xlu0 %629
    %631 = vrot.lane.b32.xlu0 %v61, 125
    %v632 = vpop.permute.xlu0 %631
    %v633 = vsel %vm162, %v626, 0
    %v635 = vsel %vm162, %v628, 0
    %v637 = vsel %vm162, %v630, 0
    %v639 = vsel %vm162, %v632, 0
    %641 = vmatpush.msra.mxu0 0.0
    %642 = vmatpush.msra.mxu0 0.0
    %643 = vmatpush.msra.mxu0 0.0
    %644 = vmatpush.msra.mxu0 0.0
    %645 = vmatpush.msra.mxu0 0.0
    %646 = vmatpush.msra.mxu0 0.0
    %647 = vmatpush.msra.mxu0 0.0
    %648 = vmatpush.msra.mxu0 0.0
    %649 = vmatpush.msra.mxu0 0.0
    %650 = vmatpush.msra.mxu0 0.0
    %651 = vmatpush.msra.mxu0 0.0
    %652 = vmatpush.msra.mxu0 0.0
    %v653 = vand.u32 %v608, 4294901760
    %654 = vmatpush.msra.mxu0 %v653
    %v655 = vand.u32 %v607, 4294901760
    %656 = vmatpush.msra.mxu0 %v655
    %v657 = vand.u32 %v606, 4294901760
    %658 = vmatpush.msra.mxu0 %v657
    %v659 = vand.u32 %v605, 4294901760
    %660 = vmatpush.msra.mxu0 %v659
    %v661 = vand.u32 %v633, 4294901760
    %v662 = vsub.f32 %v633, %v661
    %v663 = vand.u32 %v662, 4294901760
    %v664 = vsub.f32 %v662, %v663
    %v665 = vand.u32 %v664, 4294901760
    %666 = vmatmul.f32.gmra.mxu0 %v665
    %v667 = vpop.f32.mrf.mxu0
    %v668 = vadd.f32 %v611, %v667
    %v669 = vand.u32 %v635, 4294901760
    %v670 = vsub.f32 %v635, %v669
    %v671 = vand.u32 %v670, 4294901760
    %v672 = vsub.f32 %v670, %v671
    %v673 = vand.u32 %v672, 4294901760
    %674 = vmatmul.f32.gmra.mxu0 %v673
    %v675 = vpop.f32.mrf.mxu0
    %v676 = vadd.f32 %v615, %v675
    %v677 = vand.u32 %v637, 4294901760
    %v678 = vsub.f32 %v637, %v677
    %v679 = vand.u32 %v678, 4294901760
    %v680 = vsub.f32 %v678, %v679
    %v681 = vand.u32 %v680, 4294901760
    %682 = vmatmul.f32.gmra.mxu0 %v681
    %v683 = vpop.f32.mrf.mxu0
    %v684 = vadd.f32 %v619, %v683
    %v685 = vand.u32 %v639, 4294901760
    %v686 = vsub.f32 %v639, %v685
    %v687 = vand.u32 %v686, 4294901760
    %v688 = vsub.f32 %v686, %v687
    %v689 = vand.u32 %v688, 4294901760
    %690 = vmatmul.f32.gmra.mxu0 %v689
    %v691 = vpop.f32.mrf.mxu0
    %v692 = vadd.f32 %v623, %v691
    %693 = vdwg.mxu0
    %694 = vmatpush.msra.mxu0 0.0
    %695 = vmatpush.msra.mxu0 0.0
    %696 = vmatpush.msra.mxu0 0.0
    %697 = vmatpush.msra.mxu0 0.0
    %698 = vmatpush.msra.mxu0 0.0
    %699 = vmatpush.msra.mxu0 0.0
    %700 = vmatpush.msra.mxu0 0.0
    %701 = vmatpush.msra.mxu0 0.0
    %702 = vmatpush.msra.mxu0 0.0
    %703 = vmatpush.msra.mxu0 0.0
    %704 = vmatpush.msra.mxu0 0.0
    %705 = vmatpush.msra.mxu0 0.0
    %v706 = vand.u32 %v608, 4294901760
    %v707 = vsub.f32 %v608, %v706
    %v708 = vand.u32 %v707, 4294901760
    %v709 = vsub.f32 %v707, %v708
    %v710 = vand.u32 %v709, 4294901760
    %711 = vmatpush.msra.mxu0 %v710
    %v712 = vand.u32 %v607, 4294901760
    %v713 = vsub.f32 %v607, %v712
    %v714 = vand.u32 %v713, 4294901760
    %v715 = vsub.f32 %v713, %v714
    %v716 = vand.u32 %v715, 4294901760
    %717 = vmatpush.msra.mxu0 %v716
    %v718 = vand.u32 %v606, 4294901760
    %v719 = vsub.f32 %v606, %v718
    %v720 = vand.u32 %v719, 4294901760
    %v721 = vsub.f32 %v719, %v720
    %v722 = vand.u32 %v721, 4294901760
    %723 = vmatpush.msra.mxu0 %v722
    %v724 = vand.u32 %v605, 4294901760
    %v725 = vsub.f32 %v605, %v724
    %v726 = vand.u32 %v725, 4294901760
    %v727 = vsub.f32 %v725, %v726
    %v728 = vand.u32 %v727, 4294901760
    %729 = vmatpush.msra.mxu0 %v728
    %v730 = vand.u32 %v633, 4294901760
    %731 = vmatmul.f32.gmra.mxu0 %v730
    %v732 = vpop.f32.mrf.mxu0
    %v733 = vadd.f32 %v668, %v732
    %v734 = vand.u32 %v635, 4294901760
    %735 = vmatmul.f32.gmra.mxu0 %v734
    %v736 = vpop.f32.mrf.mxu0
    %v737 = vadd.f32 %v676, %v736
    %v738 = vand.u32 %v637, 4294901760
    %739 = vmatmul.f32.gmra.mxu0 %v738
    %v740 = vpop.f32.mrf.mxu0
    %v741 = vadd.f32 %v684, %v740
    %v742 = vand.u32 %v639, 4294901760
    %743 = vmatmul.f32.gmra.mxu0 %v742
    %v744 = vpop.f32.mrf.mxu0
    %v745 = vadd.f32 %v692, %v744
    %746 = vdwg.mxu0
    %747 = vmatpush.msra.mxu0 0.0
    %748 = vmatpush.msra.mxu0 0.0
    %749 = vmatpush.msra.mxu0 0.0
    %750 = vmatpush.msra.mxu0 0.0
    %751 = vmatpush.msra.mxu0 0.0
    %752 = vmatpush.msra.mxu0 0.0
    %753 = vmatpush.msra.mxu0 0.0
    %754 = vmatpush.msra.mxu0 0.0
    %755 = vmatpush.msra.mxu0 0.0
    %756 = vmatpush.msra.mxu0 0.0
    %757 = vmatpush.msra.mxu0 0.0
    %758 = vmatpush.msra.mxu0 0.0
    %v759 = vand.u32 %v608, 4294901760
    %v760 = vsub.f32 %v608, %v759
    %761 = vmatpush.msra.mxu0 %v760
    %v762 = vand.u32 %v607, 4294901760
    %v763 = vsub.f32 %v607, %v762
    %764 = vmatpush.msra.mxu0 %v763
    %v765 = vand.u32 %v606, 4294901760
    %v766 = vsub.f32 %v606, %v765
    %767 = vmatpush.msra.mxu0 %v766
    %v768 = vand.u32 %v605, 4294901760
    %v769 = vsub.f32 %v605, %v768
    %770 = vmatpush.msra.mxu0 %v769
    %v771 = vand.u32 %v633, 4294901760
    %v772 = vsub.f32 %v633, %v771
    %773 = vmatmul.f32.gmra.mxu0 %v772
    %v774 = vpop.f32.mrf.mxu0
    %v775 = vadd.f32 %v733, %v774
    %v776 = vand.u32 %v635, 4294901760
    %v777 = vsub.f32 %v635, %v776
    %778 = vmatmul.f32.gmra.mxu0 %v777
    %v779 = vpop.f32.mrf.mxu0
    %v780 = vadd.f32 %v737, %v779
    %v781 = vand.u32 %v637, 4294901760
    %v782 = vsub.f32 %v637, %v781
    %783 = vmatmul.f32.gmra.mxu0 %v782
    %v784 = vpop.f32.mrf.mxu0
    %v785 = vadd.f32 %v741, %v784
    %v786 = vand.u32 %v639, 4294901760
    %v787 = vsub.f32 %v639, %v786
    %788 = vmatmul.f32.gmra.mxu0 %v787
    %v789 = vpop.f32.mrf.mxu0
    %v790 = vadd.f32 %v745, %v789
    %791 = vdwg.mxu0
    %792 = vmatpush.msra.mxu0 0.0
    %793 = vmatpush.msra.mxu0 0.0
    %794 = vmatpush.msra.mxu0 0.0
    %795 = vmatpush.msra.mxu0 0.0
    %796 = vmatpush.msra.mxu0 0.0
    %797 = vmatpush.msra.mxu0 0.0
    %798 = vmatpush.msra.mxu0 0.0
    %799 = vmatpush.msra.mxu0 0.0
    %800 = vmatpush.msra.mxu0 0.0
    %801 = vmatpush.msra.mxu0 0.0
    %802 = vmatpush.msra.mxu0 0.0
    %803 = vmatpush.msra.mxu0 0.0
    %v804 = vand.u32 %v608, 4294901760
    %805 = vmatpush.msra.mxu0 %v804
    %v806 = vand.u32 %v607, 4294901760
    %807 = vmatpush.msra.mxu0 %v806
    %v808 = vand.u32 %v606, 4294901760
    %809 = vmatpush.msra.mxu0 %v808
    %v810 = vand.u32 %v605, 4294901760
    %811 = vmatpush.msra.mxu0 %v810
    %v812 = vand.u32 %v633, 4294901760
    %v813 = vsub.f32 %v633, %v812
    %v814 = vand.u32 %v813, 4294901760
    %815 = vmatmul.f32.gmra.mxu0 %v814
    %v816 = vpop.f32.mrf.mxu0
    %v817 = vadd.f32 %v775, %v816
    %v818 = vand.u32 %v635, 4294901760
    %v819 = vsub.f32 %v635, %v818
    %v820 = vand.u32 %v819, 4294901760
    %821 = vmatmul.f32.gmra.mxu0 %v820
    %v822 = vpop.f32.mrf.mxu0
    %v823 = vadd.f32 %v780, %v822
    %v824 = vand.u32 %v637, 4294901760
    %v825 = vsub.f32 %v637, %v824
    %v826 = vand.u32 %v825, 4294901760
    %827 = vmatmul.f32.gmra.mxu0 %v826
    %v828 = vpop.f32.mrf.mxu0
    %v829 = vadd.f32 %v785, %v828
    %v830 = vand.u32 %v639, 4294901760
    %v831 = vsub.f32 %v639, %v830
    %v832 = vand.u32 %v831, 4294901760
    %833 = vmatmul.f32.gmra.mxu0 %v832
    %v834 = vpop.f32.mrf.mxu0
    %v835 = vadd.f32 %v790, %v834
    %836 = vdwg.mxu0
    %837 = vmatpush.msra.mxu0 0.0
    %838 = vmatpush.msra.mxu0 0.0
    %839 = vmatpush.msra.mxu0 0.0
    %840 = vmatpush.msra.mxu0 0.0
    %841 = vmatpush.msra.mxu0 0.0
    %842 = vmatpush.msra.mxu0 0.0
    %843 = vmatpush.msra.mxu0 0.0
    %844 = vmatpush.msra.mxu0 0.0
    %845 = vmatpush.msra.mxu0 0.0
    %846 = vmatpush.msra.mxu0 0.0
    %847 = vmatpush.msra.mxu0 0.0
    %848 = vmatpush.msra.mxu0 0.0
    %v849 = vand.u32 %v608, 4294901760
    %v850 = vsub.f32 %v608, %v849
    %v851 = vand.u32 %v850, 4294901760
    %852 = vmatpush.msra.mxu0 %v851
    %v853 = vand.u32 %v607, 4294901760
    %v854 = vsub.f32 %v607, %v853
    %v855 = vand.u32 %v854, 4294901760
    %856 = vmatpush.msra.mxu0 %v855
    %v857 = vand.u32 %v606, 4294901760
    %v858 = vsub.f32 %v606, %v857
    %v859 = vand.u32 %v858, 4294901760
    %860 = vmatpush.msra.mxu0 %v859
    %v861 = vand.u32 %v605, 4294901760
    %v862 = vsub.f32 %v605, %v861
    %v863 = vand.u32 %v862, 4294901760
    %864 = vmatpush.msra.mxu0 %v863
    %v865 = vand.u32 %v633, 4294901760
    %866 = vmatmul.f32.gmra.mxu0 %v865
    %v867 = vpop.f32.mrf.mxu0
    %v868 = vadd.f32 %v817, %v867
    %v869 = vand.u32 %v635, 4294901760
    %870 = vmatmul.f32.gmra.mxu0 %v869
    %v871 = vpop.f32.mrf.mxu0
    %v872 = vadd.f32 %v823, %v871
    %v873 = vand.u32 %v637, 4294901760
    %874 = vmatmul.f32.gmra.mxu0 %v873
    %v875 = vpop.f32.mrf.mxu0
    %v876 = vadd.f32 %v829, %v875
    %v877 = vand.u32 %v639, 4294901760
    %878 = vmatmul.f32.gmra.mxu0 %v877
    %v879 = vpop.f32.mrf.mxu0
    %v880 = vadd.f32 %v835, %v879
    %881 = vdwg.mxu0
    %882 = vmatpush.msra.mxu0 0.0
    %883 = vmatpush.msra.mxu0 0.0
    %884 = vmatpush.msra.mxu0 0.0
    %885 = vmatpush.msra.mxu0 0.0
    %886 = vmatpush.msra.mxu0 0.0
    %887 = vmatpush.msra.mxu0 0.0
    %888 = vmatpush.msra.mxu0 0.0
    %889 = vmatpush.msra.mxu0 0.0
    %890 = vmatpush.msra.mxu0 0.0
    %891 = vmatpush.msra.mxu0 0.0
    %892 = vmatpush.msra.mxu0 0.0
    %893 = vmatpush.msra.mxu0 0.0
    %v894 = vand.u32 %v608, 4294901760
    %895 = vmatpush.msra.mxu0 %v894
    %v896 = vand.u32 %v607, 4294901760
    %897 = vmatpush.msra.mxu0 %v896
    %v898 = vand.u32 %v606, 4294901760
    %899 = vmatpush.msra.mxu0 %v898
    %v900 = vand.u32 %v605, 4294901760
    %901 = vmatpush.msra.mxu0 %v900
    %v902 = vand.u32 %v633, 4294901760
    %903 = vmatmul.f32.gmra.mxu0 %v902
    %v904 = vpop.f32.mrf.mxu0
    %v905 = vadd.f32 %v868, %v904
    %v906 = vand.u32 %v635, 4294901760
    %907 = vmatmul.f32.gmra.mxu0 %v906
    %v908 = vpop.f32.mrf.mxu0
    %v909 = vadd.f32 %v872, %v908
    %v910 = vand.u32 %v637, 4294901760
    %911 = vmatmul.f32.gmra.mxu0 %v910
    %v912 = vpop.f32.mrf.mxu0
    %v913 = vadd.f32 %v876, %v912
    %v914 = vand.u32 %v639, 4294901760
    %915 = vmatmul.f32.gmra.mxu0 %v914
    %v916 = vpop.f32.mrf.mxu0
    %v917 = vadd.f32 %v880, %v916
    %918 = vdwg.mxu0
    %919 = vmatpush.msra.mxu0 0.0
    %920 = vmatpush.msra.mxu0 0.0
    %921 = vmatpush.msra.mxu0 0.0
    %922 = vmatpush.msra.mxu0 0.0
    %923 = vmatpush.msra.mxu0 0.0
    %924 = vmatpush.msra.mxu0 0.0
    %925 = vmatpush.msra.mxu0 0.0
    %926 = vmatpush.msra.mxu0 0.0
    %927 = vmatpush.msra.mxu0 0.0
    %928 = vmatpush.msra.mxu0 0.0
    %929 = vmatpush.msra.mxu0 0.0
    %930 = vmatpush.msra.mxu0 0.0
    %v931 = vand.u32 %v917, 4294901760
    %932 = vmatpush.msra.mxu0 %v931
    %v933 = vand.u32 %v913, 4294901760
    %934 = vmatpush.msra.mxu0 %v933
    %v935 = vand.u32 %v909, 4294901760
    %936 = vmatpush.msra.mxu0 %v935
    %v937 = vand.u32 %v905, 4294901760
    %938 = vmatpush.msra.mxu0 %v937
    %v939 = vand.u32 %v164, 4294901760
    %v940 = vsub.f32 %v164, %v939
    %v941 = vand.u32 %v940, 4294901760
    %v942 = vsub.f32 %v940, %v941
    %v943 = vand.u32 %v942, 4294901760
    %944 = vmatmul.f32.gmra.mxu0 %v943
    %v945 = vpop.f32.mrf.mxu0
    %v946 = vadd.f32 0.0, %v945
    %947 = vdwg.mxu0
    %948 = vmatpush.msra.mxu0 0.0
    %949 = vmatpush.msra.mxu0 0.0
    %950 = vmatpush.msra.mxu0 0.0
    %951 = vmatpush.msra.mxu0 0.0
    %952 = vmatpush.msra.mxu0 0.0
    %953 = vmatpush.msra.mxu0 0.0
    %954 = vmatpush.msra.mxu0 0.0
    %955 = vmatpush.msra.mxu0 0.0
    %956 = vmatpush.msra.mxu0 0.0
    %957 = vmatpush.msra.mxu0 0.0
    %958 = vmatpush.msra.mxu0 0.0
    %959 = vmatpush.msra.mxu0 0.0
    %v960 = vand.u32 %v917, 4294901760
    %v961 = vsub.f32 %v917, %v960
    %v962 = vand.u32 %v961, 4294901760
    %v963 = vsub.f32 %v961, %v962
    %v964 = vand.u32 %v963, 4294901760
    %965 = vmatpush.msra.mxu0 %v964
    %v966 = vand.u32 %v913, 4294901760
    %v967 = vsub.f32 %v913, %v966
    %v968 = vand.u32 %v967, 4294901760
    %v969 = vsub.f32 %v967, %v968
    %v970 = vand.u32 %v969, 4294901760
    %971 = vmatpush.msra.mxu0 %v970
    %v972 = vand.u32 %v909, 4294901760
    %v973 = vsub.f32 %v909, %v972
    %v974 = vand.u32 %v973, 4294901760
    %v975 = vsub.f32 %v973, %v974
    %v976 = vand.u32 %v975, 4294901760
    %977 = vmatpush.msra.mxu0 %v976
    %v978 = vand.u32 %v905, 4294901760
    %v979 = vsub.f32 %v905, %v978
    %v980 = vand.u32 %v979, 4294901760
    %v981 = vsub.f32 %v979, %v980
    %v982 = vand.u32 %v981, 4294901760
    %983 = vmatpush.msra.mxu0 %v982
    %v984 = vand.u32 %v164, 4294901760
    %985 = vmatmul.f32.gmra.mxu0 %v984
    %v986 = vpop.f32.mrf.mxu0
    %v987 = vadd.f32 %v946, %v986
    %988 = vdwg.mxu0
    %989 = vmatpush.msra.mxu0 0.0
    %990 = vmatpush.msra.mxu0 0.0
    %991 = vmatpush.msra.mxu0 0.0
    %992 = vmatpush.msra.mxu0 0.0
    %993 = vmatpush.msra.mxu0 0.0
    %994 = vmatpush.msra.mxu0 0.0
    %995 = vmatpush.msra.mxu0 0.0
    %996 = vmatpush.msra.mxu0 0.0
    %997 = vmatpush.msra.mxu0 0.0
    %998 = vmatpush.msra.mxu0 0.0
    %999 = vmatpush.msra.mxu0 0.0
    %1000 = vmatpush.msra.mxu0 0.0
    %v1001 = vand.u32 %v917, 4294901760
    %v1002 = vsub.f32 %v917, %v1001
    %1003 = vmatpush.msra.mxu0 %v1002
    %v1004 = vand.u32 %v913, 4294901760
    %v1005 = vsub.f32 %v913, %v1004
    %1006 = vmatpush.msra.mxu0 %v1005
    %v1007 = vand.u32 %v909, 4294901760
    %v1008 = vsub.f32 %v909, %v1007
    %1009 = vmatpush.msra.mxu0 %v1008
    %v1010 = vand.u32 %v905, 4294901760
    %v1011 = vsub.f32 %v905, %v1010
    %1012 = vmatpush.msra.mxu0 %v1011
    %v1013 = vand.u32 %v164, 4294901760
    %v1014 = vsub.f32 %v164, %v1013
    %1015 = vmatmul.f32.gmra.mxu0 %v1014
    %v1016 = vpop.f32.mrf.mxu0
    %v1017 = vadd.f32 %v987, %v1016
    %1018 = vdwg.mxu0
    %1019 = vmatpush.msra.mxu0 0.0
    %1020 = vmatpush.msra.mxu0 0.0
    %1021 = vmatpush.msra.mxu0 0.0
    %1022 = vmatpush.msra.mxu0 0.0
    %1023 = vmatpush.msra.mxu0 0.0
    %1024 = vmatpush.msra.mxu0 0.0
    %1025 = vmatpush.msra.mxu0 0.0
    %1026 = vmatpush.msra.mxu0 0.0
    %1027 = vmatpush.msra.mxu0 0.0
    %1028 = vmatpush.msra.mxu0 0.0
    %1029 = vmatpush.msra.mxu0 0.0
    %1030 = vmatpush.msra.mxu0 0.0
    %v1031 = vand.u32 %v917, 4294901760
    %1032 = vmatpush.msra.mxu0 %v1031
    %v1033 = vand.u32 %v913, 4294901760
    %1034 = vmatpush.msra.mxu0 %v1033
    %v1035 = vand.u32 %v909, 4294901760
    %1036 = vmatpush.msra.mxu0 %v1035
    %v1037 = vand.u32 %v905, 4294901760
    %1038 = vmatpush.msra.mxu0 %v1037
    %v1039 = vand.u32 %v164, 4294901760
    %v1040 = vsub.f32 %v164, %v1039
    %v1041 = vand.u32 %v1040, 4294901760
    %1042 = vmatmul.f32.gmra.mxu0 %v1041
    %v1043 = vpop.f32.mrf.mxu0
    %v1044 = vadd.f32 %v1017, %v1043
    %1045 = vdwg.mxu0
    %1046 = vmatpush.msra.mxu0 0.0
    %1047 = vmatpush.msra.mxu0 0.0
    %1048 = vmatpush.msra.mxu0 0.0
    %1049 = vmatpush.msra.mxu0 0.0
    %1050 = vmatpush.msra.mxu0 0.0
    %1051 = vmatpush.msra.mxu0 0.0
    %1052 = vmatpush.msra.mxu0 0.0
    %1053 = vmatpush.msra.mxu0 0.0
    %1054 = vmatpush.msra.mxu0 0.0
    %1055 = vmatpush.msra.mxu0 0.0
    %1056 = vmatpush.msra.mxu0 0.0
    %1057 = vmatpush.msra.mxu0 0.0
    %v1058 = vand.u32 %v917, 4294901760
    %v1059 = vsub.f32 %v917, %v1058
    %v1060 = vand.u32 %v1059, 4294901760
    %1061 = vmatpush.msra.mxu0 %v1060
    %v1062 = vand.u32 %v913, 4294901760
    %v1063 = vsub.f32 %v913, %v1062
    %v1064 = vand.u32 %v1063, 4294901760
    %1065 = vmatpush.msra.mxu0 %v1064
    %v1066 = vand.u32 %v909, 4294901760
    %v1067 = vsub.f32 %v909, %v1066
    %v1068 = vand.u32 %v1067, 4294901760
    %1069 = vmatpush.msra.mxu0 %v1068
    %v1070 = vand.u32 %v905, 4294901760
    %v1071 = vsub.f32 %v905, %v1070
    %v1072 = vand.u32 %v1071, 4294901760
    %1073 = vmatpush.msra.mxu0 %v1072
    %v1074 = vand.u32 %v164, 4294901760
    %1075 = vmatmul.f32.gmra.mxu0 %v1074
    %v1076 = vpop.f32.mrf.mxu0
    %v1077 = vadd.f32 %v1044, %v1076
    %1078 = vdwg.mxu0
    %1079 = vmatpush.msra.mxu0 0.0
    %1080 = vmatpush.msra.mxu0 0.0
    %1081 = vmatpush.msra.mxu0 0.0
    %1082 = vmatpush.msra.mxu0 0.0
    %1083 = vmatpush.msra.mxu0 0.0
    %1084 = vmatpush.msra.mxu0 0.0
    %1085 = vmatpush.msra.mxu0 0.0
    %1086 = vmatpush.msra.mxu0 0.0
    %1087 = vmatpush.msra.mxu0 0.0
    %1088 = vmatpush.msra.mxu0 0.0
    %1089 = vmatpush.msra.mxu0 0.0
    %1090 = vmatpush.msra.mxu0 0.0
    %v1091 = vand.u32 %v917, 4294901760
    %1092 = vmatpush.msra.mxu0 %v1091
    %v1093 = vand.u32 %v913, 4294901760
    %1094 = vmatpush.msra.mxu0 %v1093
    %v1095 = vand.u32 %v909, 4294901760
    %1096 = vmatpush.msra.mxu0 %v1095
    %v1097 = vand.u32 %v905, 4294901760
    %1098 = vmatpush.msra.mxu0 %v1097
    %v1099 = vand.u32 %v164, 4294901760
    %1100 = vmatmul.f32.gmra.mxu0 %v1099
    %v1101 = vpop.f32.mrf.mxu0
    %v1102 = vadd.f32 %v1077, %v1101
    %1103 = vdwg.mxu0
    %v1104 = vmul.f32 %v905, %v905
    %v1105 = vmul.f32 %v909, %v909
    %v1106 = vmul.f32 %v913, %v913
    %v1107 = vmul.f32 %v917, %v917
    %1108 = vmatpush.msra.mxu0 0.0
    %1109 = vmatpush.msra.mxu0 0.0
    %1110 = vmatpush.msra.mxu0 0.0
    %1111 = vmatpush.msra.mxu0 0.0
    %1112 = vmatpush.msra.mxu0 0.0
    %1113 = vmatpush.msra.mxu0 0.0
    %1114 = vmatpush.msra.mxu0 0.0
    %1115 = vmatpush.msra.mxu0 0.0
    %1116 = vmatpush.msra.mxu0 0.0
    %1117 = vmatpush.msra.mxu0 0.0
    %1118 = vmatpush.msra.mxu0 0.0
    %1119 = vmatpush.msra.mxu0 0.0
    %v1120 = vand.u32 %v1107, 4294901760
    %1121 = vmatpush.msra.mxu0 %v1120
    %v1122 = vand.u32 %v1106, 4294901760
    %1123 = vmatpush.msra.mxu0 %v1122
    %v1124 = vand.u32 %v1105, 4294901760
    %1125 = vmatpush.msra.mxu0 %v1124
    %v1126 = vand.u32 %v1104, 4294901760
    %1127 = vmatpush.msra.mxu0 %v1126
    %v1128 = vand.u32 %v164, 4294901760
    %v1129 = vsub.f32 %v164, %v1128
    %v1130 = vand.u32 %v1129, 4294901760
    %v1131 = vsub.f32 %v1129, %v1130
    %v1132 = vand.u32 %v1131, 4294901760
    %1133 = vmatmul.f32.gmra.mxu0 %v1132
    %v1134 = vpop.f32.mrf.mxu0
    %v1135 = vadd.f32 0.0, %v1134
    %1136 = vdwg.mxu0
    %1137 = vmatpush.msra.mxu0 0.0
    %1138 = vmatpush.msra.mxu0 0.0
    %1139 = vmatpush.msra.mxu0 0.0
    %1140 = vmatpush.msra.mxu0 0.0
    %1141 = vmatpush.msra.mxu0 0.0
    %1142 = vmatpush.msra.mxu0 0.0
    %1143 = vmatpush.msra.mxu0 0.0
    %1144 = vmatpush.msra.mxu0 0.0
    %1145 = vmatpush.msra.mxu0 0.0
    %1146 = vmatpush.msra.mxu0 0.0
    %1147 = vmatpush.msra.mxu0 0.0
    %1148 = vmatpush.msra.mxu0 0.0
    %v1149 = vand.u32 %v1107, 4294901760
    %v1150 = vsub.f32 %v1107, %v1149
    %v1151 = vand.u32 %v1150, 4294901760
    %v1152 = vsub.f32 %v1150, %v1151
    %v1153 = vand.u32 %v1152, 4294901760
    %1154 = vmatpush.msra.mxu0 %v1153
    %v1155 = vand.u32 %v1106, 4294901760
    %v1156 = vsub.f32 %v1106, %v1155
    %v1157 = vand.u32 %v1156, 4294901760
    %v1158 = vsub.f32 %v1156, %v1157
    %v1159 = vand.u32 %v1158, 4294901760
    %1160 = vmatpush.msra.mxu0 %v1159
    %v1161 = vand.u32 %v1105, 4294901760
    %v1162 = vsub.f32 %v1105, %v1161
    %v1163 = vand.u32 %v1162, 4294901760
    %v1164 = vsub.f32 %v1162, %v1163
    %v1165 = vand.u32 %v1164, 4294901760
    %1166 = vmatpush.msra.mxu0 %v1165
    %v1167 = vand.u32 %v1104, 4294901760
    %v1168 = vsub.f32 %v1104, %v1167
    %v1169 = vand.u32 %v1168, 4294901760
    %v1170 = vsub.f32 %v1168, %v1169
    %v1171 = vand.u32 %v1170, 4294901760
    %1172 = vmatpush.msra.mxu0 %v1171
    %v1173 = vand.u32 %v164, 4294901760
    %1174 = vmatmul.f32.gmra.mxu0 %v1173
    %v1175 = vpop.f32.mrf.mxu0
    %v1176 = vadd.f32 %v1135, %v1175
    %1177 = vdwg.mxu0
    %1178 = vmatpush.msra.mxu0 0.0
    %1179 = vmatpush.msra.mxu0 0.0
    %1180 = vmatpush.msra.mxu0 0.0
    %1181 = vmatpush.msra.mxu0 0.0
    %1182 = vmatpush.msra.mxu0 0.0
    %1183 = vmatpush.msra.mxu0 0.0
    %1184 = vmatpush.msra.mxu0 0.0
    %1185 = vmatpush.msra.mxu0 0.0
    %1186 = vmatpush.msra.mxu0 0.0
    %1187 = vmatpush.msra.mxu0 0.0
    %1188 = vmatpush.msra.mxu0 0.0
    %1189 = vmatpush.msra.mxu0 0.0
    %v1190 = vand.u32 %v1107, 4294901760
    %v1191 = vsub.f32 %v1107, %v1190
    %1192 = vmatpush.msra.mxu0 %v1191
    %v1193 = vand.u32 %v1106, 4294901760
    %v1194 = vsub.f32 %v1106, %v1193
    %1195 = vmatpush.msra.mxu0 %v1194
    %v1196 = vand.u32 %v1105, 4294901760
    %v1197 = vsub.f32 %v1105, %v1196
    %1198 = vmatpush.msra.mxu0 %v1197
    %v1199 = vand.u32 %v1104, 4294901760
    %v1200 = vsub.f32 %v1104, %v1199
    %1201 = vmatpush.msra.mxu0 %v1200
    %v1202 = vand.u32 %v164, 4294901760
    %v1203 = vsub.f32 %v164, %v1202
    %1204 = vmatmul.f32.gmra.mxu0 %v1203
    %v1205 = vpop.f32.mrf.mxu0
    %v1206 = vadd.f32 %v1176, %v1205
    %1207 = vdwg.mxu0
    %1208 = vmatpush.msra.mxu0 0.0
    %1209 = vmatpush.msra.mxu0 0.0
    %1210 = vmatpush.msra.mxu0 0.0
    %1211 = vmatpush.msra.mxu0 0.0
    %1212 = vmatpush.msra.mxu0 0.0
    %1213 = vmatpush.msra.mxu0 0.0
    %1214 = vmatpush.msra.mxu0 0.0
    %1215 = vmatpush.msra.mxu0 0.0
    %1216 = vmatpush.msra.mxu0 0.0
    %1217 = vmatpush.msra.mxu0 0.0
    %1218 = vmatpush.msra.mxu0 0.0
    %1219 = vmatpush.msra.mxu0 0.0
    %v1220 = vand.u32 %v1107, 4294901760
    %1221 = vmatpush.msra.mxu0 %v1220
    %v1222 = vand.u32 %v1106, 4294901760
    %1223 = vmatpush.msra.mxu0 %v1222
    %v1224 = vand.u32 %v1105, 4294901760
    %1225 = vmatpush.msra.mxu0 %v1224
    %v1226 = vand.u32 %v1104, 4294901760
    %1227 = vmatpush.msra.mxu0 %v1226
    %v1228 = vand.u32 %v164, 4294901760
    %v1229 = vsub.f32 %v164, %v1228
    %v1230 = vand.u32 %v1229, 4294901760
    %1231 = vmatmul.f32.gmra.mxu0 %v1230
    %v1232 = vpop.f32.mrf.mxu0
    %v1233 = vadd.f32 %v1206, %v1232
    %1234 = vdwg.mxu0
    %1235 = vmatpush.msra.mxu0 0.0
    %1236 = vmatpush.msra.mxu0 0.0
    %1237 = vmatpush.msra.mxu0 0.0
    %1238 = vmatpush.msra.mxu0 0.0
    %1239 = vmatpush.msra.mxu0 0.0
    %1240 = vmatpush.msra.mxu0 0.0
    %1241 = vmatpush.msra.mxu0 0.0
    %1242 = vmatpush.msra.mxu0 0.0
    %1243 = vmatpush.msra.mxu0 0.0
    %1244 = vmatpush.msra.mxu0 0.0
    %1245 = vmatpush.msra.mxu0 0.0
    %1246 = vmatpush.msra.mxu0 0.0
    %v1247 = vand.u32 %v1107, 4294901760
    %v1248 = vsub.f32 %v1107, %v1247
    %v1249 = vand.u32 %v1248, 4294901760
    %1250 = vmatpush.msra.mxu0 %v1249
    %v1251 = vand.u32 %v1106, 4294901760
    %v1252 = vsub.f32 %v1106, %v1251
    %v1253 = vand.u32 %v1252, 4294901760
    %1254 = vmatpush.msra.mxu0 %v1253
    %v1255 = vand.u32 %v1105, 4294901760
    %v1256 = vsub.f32 %v1105, %v1255
    %v1257 = vand.u32 %v1256, 4294901760
    %1258 = vmatpush.msra.mxu0 %v1257
    %v1259 = vand.u32 %v1104, 4294901760
    %v1260 = vsub.f32 %v1104, %v1259
    %v1261 = vand.u32 %v1260, 4294901760
    %1262 = vmatpush.msra.mxu0 %v1261
    %v1263 = vand.u32 %v164, 4294901760
    %1264 = vmatmul.f32.gmra.mxu0 %v1263
    %v1265 = vpop.f32.mrf.mxu0
    %v1266 = vadd.f32 %v1233, %v1265
    %1267 = vdwg.mxu0
    %1268 = vmatpush.msra.mxu0 0.0
    %1269 = vmatpush.msra.mxu0 0.0
    %1270 = vmatpush.msra.mxu0 0.0
    %1271 = vmatpush.msra.mxu0 0.0
    %1272 = vmatpush.msra.mxu0 0.0
    %1273 = vmatpush.msra.mxu0 0.0
    %1274 = vmatpush.msra.mxu0 0.0
    %1275 = vmatpush.msra.mxu0 0.0
    %1276 = vmatpush.msra.mxu0 0.0
    %1277 = vmatpush.msra.mxu0 0.0
    %1278 = vmatpush.msra.mxu0 0.0
    %1279 = vmatpush.msra.mxu0 0.0
    %v1280 = vand.u32 %v1107, 4294901760
    %1281 = vmatpush.msra.mxu0 %v1280
    %v1282 = vand.u32 %v1106, 4294901760
    %1283 = vmatpush.msra.mxu0 %v1282
    %v1284 = vand.u32 %v1105, 4294901760
    %1285 = vmatpush.msra.mxu0 %v1284
    %v1286 = vand.u32 %v1104, 4294901760
    %1287 = vmatpush.msra.mxu0 %v1286
    %v1288 = vand.u32 %v164, 4294901760
    %1289 = vmatmul.f32.gmra.mxu0 %v1288
    %v1290 = vpop.f32.mrf.mxu0
    %v1291 = vadd.f32 %v1266, %v1290
    %1292 = vdwg.mxu0
    %v1293 = vmul.f32 %v1102, 0.03125
    %v1294 = vmul.f32 %v1291, 0.03125
    %v1295 = vmul.f32 %v1293, %v1293
    %v1296 = vsub.f32 %v1294, %v1295
    %v1297 = vperm.slane %v1293, 0
    %v1298 = vsub.f32 %v905, %v1297
    %v1299 = vsub.f32 %v909, %v1297
    %v1300 = vsub.f32 %v913, %v1297
    %v1301 = vsub.f32 %v917, %v1297
    %v1302 = vadd.f32 %v1296, 1e-05
    %v1303 = vrsqrt.pop %v1302
    %v1304 = vmul.f32 %v1303, %v1302
    %v1305 = vmul.f32 %v1304, %v1303
    %v1306 = vmul.f32 0.5, %v1305
    %v1307 = vsub.f32 1.5, %v1306
    %v1308 = vmul.f32 %v1303, %v1307
    %vm1309 = vweird.f32 %v1302
    %vm1310 = vweird.f32 %v1303
    %vm1311 = vmor %vm1309, %vm1310
    %v1312 = vsel %vm1311, %v1303, %v1308
    %v1313 = vperm.slane %v1312, 0
    %v1314 = vmul.f32 %v1298, %v1313
    %v1315 = vmul.f32 %v1299, %v1313
    %v1316 = vmul.f32 %v1300, %v1313
    %v1317 = vmul.f32 %v1301, %v1313
    %1318 = vset.pattern.permute.xlu0 39
    %1319 = vperm.xlu0 %1318, %v58
    %v1320 = vpop.permute.xlu0 %1319
    %1322 = vset.pattern.permute.xlu0 39
    %1323 = vperm.xlu0 %1322, %v59
    %v1324 = vpop.permute.xlu0 %1323
    %1326 = vset.pattern.permute.xlu0 39
    %1327 = vperm.xlu0 %1326, %v60
    %v1328 = vpop.permute.xlu0 %1327
    %1330 = vset.pattern.permute.xlu0 39
    %1331 = vperm.xlu0 %1330, %v61
    %v1332 = vpop.permute.xlu0 %1331
    %v1334 = vmul.f32 %v1314, %v1320
    %v1335 = vmul.f32 %v1315, %v1324
    %v1336 = vmul.f32 %v1316, %v1328
    %v1337 = vmul.f32 %v1317, %v1332
    %1338 = vset.pattern.permute.xlu0 40
    %1339 = vperm.xlu0 %1338, %v58
    %v1340 = vpop.permute.xlu0 %1339
    %1342 = vset.pattern.permute.xlu0 40
    %1343 = vperm.xlu0 %1342, %v59
    %v1344 = vpop.permute.xlu0 %1343
    %1346 = vset.pattern.permute.xlu0 40
    %1347 = vperm.xlu0 %1346, %v60
    %v1348 = vpop.permute.xlu0 %1347
    %1350 = vset.pattern.permute.xlu0 40
    %1351 = vperm.xlu0 %1350, %v61
    %v1352 = vpop.permute.xlu0 %1351
    %v1354 = vadd.f32 %v1334, %v1340
    %v1355 = vadd.f32 %v1335, %v1344
    %v1356 = vadd.f32 %v1336, %v1348
    %v1357 = vadd.f32 %v1337, %v1352
    %v1358 = vmax.f32 %v1354, 0.0
    %v1359 = vmax.f32 %v1355, 0.0
    %v1360 = vmax.f32 %v1356, 0.0
    %v1361 = vmax.f32 %v1357, 0.0
    %1362 = vset.pattern.permute.xlu0 41
    %1363 = vperm.xlu0 %1362, %v58
    %v1364 = vpop.permute.xlu0 %1363
    %1366 = vset.pattern.permute.xlu0 41
    %1367 = vperm.xlu0 %1366, %v59
    %v1368 = vpop.permute.xlu0 %1367
    %1370 = vset.pattern.permute.xlu0 41
    %1371 = vperm.xlu0 %1370, %v60
    %v1372 = vpop.permute.xlu0 %1371
    %1374 = vset.pattern.permute.xlu0 41
    %1375 = vperm.xlu0 %1374, %v61
    %v1376 = vpop.permute.xlu0 %1375
    %v1378 = vmul.f32 %v1364, %v1358
    %v1379 = vmul.f32 %v1368, %v1359
    %v1380 = vmul.f32 %v1372, %v1360
    %v1381 = vmul.f32 %v1376, %v1361
    %v1382 = vadd.f32 %v1378, %v1379
    %v1383 = vadd.f32 %v1382, %v1380
    %v1384 = vadd.f32 %v1383, %v1381
    %v1385 = vrot.slane %v1384, 4
    %v1386 = vadd.f32 %v1384, %v1385
    %v1387 = vrot.slane %v1386, 2
    %v1388 = vadd.f32 %v1386, %v1387
    %v1389 = vrot.slane %v1388, 1
    %v1390 = vadd.f32 %v1388, %v1389
    %1392 = vset.pattern.permute.xlu0 42
    %1393 = vperm.xlu0 %1392, %v62
    %v1394 = vpop.permute.xlu0 %1393
    %v1396 = vadd.f32 %v1390, %v1394
    %1397 = vst [vmem:[#allocation8] sm:$0x1] %v1396
    // Predicated region
    $region26: #{tpu_custom_call.1} parent=1 // pred_check
      _
    $region27: #{tpu_custom_call.1} parent=1 // pred_check_branch
      %1399 = sbr.rel (0) target = $region29
    $region28: #{tpu_custom_call.1} parent=1 // pred_region
      %1401 = vsyncadd [#allocation4], 0
      %s1403 = sshll.u32 [#allocation8], 4
      %s1404 = int_to_ptr.vmem [resolvable:$true] %s1403
      %s1405 = sshll.u32 %s3, 4
      %s1406 = int_to_ptr.hbm [resolvable:$true] %s1405
      %1408 = dma.vmem_to_hbm [thread:$0]  %s1404, 16, %s1406, [#allocation4]
    $region29: #{tpu_custom_call.1} parent=1 // pred_fallthru
      _
    // Predicated region
    $region30: #{tpu_custom_call.1} parent=1 // pred_check
      _
    $region31: #{tpu_custom_call.1} parent=1 // pred_check_branch
      %1410 = sbr.rel (0) target = $region33
    $region32: #{tpu_custom_call.1} parent=1 // pred_region
      %1412 = dma.done [#allocation4], 16
    $region33: #{tpu_custom_call.1} parent=1 // pred_fallthru
      _
    %1413 = vsyncpa [#allocation3], 1
    %1414 = vsyncpa [#allocation6], 1
    %1415 = vsyncpa [#allocation4], 1

</llo_original>
